<compile_context>
chip_gen: v6e
topology: v6e:2x2x1
jax: 0.10.0
libtpu: 0.0.40
codegen_flags: <defaults>
</compile_context>

<pallas_src>
import numpy as np
import jax
import jax.numpy as jnp
from jax.experimental import pallas as pl
from jax.experimental.pallas import tpu as pltpu


# ----------------------------------------------------------------------------
# Host-side constant builders
# ----------------------------------------------------------------------------
def _bilinear_matrix(n_in, n_out):
    """1-D bilinear interpolation matrix (align_corners=True, torch semantics)."""
    if n_out == 1 or n_in == 1:
        m = np.zeros((n_out, n_in), np.float32)
        m[:, 0] = 1.0
        return m
    src = np.arange(n_out, dtype=np.float64) * (n_in - 1) / (n_out - 1)
    i0 = np.clip(np.floor(src).astype(np.int64), 0, n_in - 1)
    i1 = np.minimum(i0 + 1, n_in - 1)
    frac = (src - i0).astype(np.float32)
    m = np.zeros((n_out, n_in), np.float32)
    m[np.arange(n_out), i0] += 1.0 - frac
    m[np.arange(n_out), i1] += frac
    return m


def _w_pass_matrix(W1, W2, diffX):
    """(W1, W2): x1 row -> 2x bilinear-upsampled row placed at F.pad's column offset."""
    uw = _bilinear_matrix(W1, 2 * W1)                    # (2*W1, W1)
    m = np.zeros((W1, W2), np.float32)
    m[:, diffX // 2: diffX // 2 + 2 * W1] = uw.T
    return m


def _h_row_terms(H1, H2, diffY):
    """Per output row h2: list of (h1, weight) source terms (<=2) incl. F.pad placement."""
    H2u = 2 * H1
    uh = _bilinear_matrix(H1, H2u)                       # (2*H1, H1)
    pad0 = diffY // 2
    terms = []
    for h2 in range(H2):
        h2u = h2 - pad0
        row = []
        if 0 <= h2u < H2u:
            for h1 in np.nonzero(uh[h2u])[0]:
                row.append((int(h1), float(uh[h2u, h1])))
        terms.append(row)
    return terms


def _conv_border_masks(H, W):
    """(9, H*W) 0/1 masks: validity of tap (kh,kw) for a 3x3 'same' conv (zero pad)."""
    hh, ww = np.meshgrid(np.arange(H), np.arange(W), indexing="ij")
    masks = np.zeros((9, H * W), np.float32)
    for kh in range(3):
        for kw in range(3):
            dh, dw = kh - 1, kw - 1
            valid = (hh + dh >= 0) & (hh + dh < H) & (ww + dw >= 0) & (ww + dw < W)
            masks[kh * 3 + kw] = valid.astype(np.float32).ravel()
    return masks


# ----------------------------------------------------------------------------
# One-time probes / hardware queries
# ----------------------------------------------------------------------------
_ROLL_MODE = None


def _get_roll_mode():
    """+1 if pltpu.roll matches jnp.roll's direction, -1 if reversed, 0 -> slice+concat."""
    global _ROLL_MODE
    if _ROLL_MODE is not None:
        return _ROLL_MODE
    try:
        def k(x_ref, o_ref):
            o_ref[...] = pltpu.roll(x_ref[...], 1, 1)

        x = jnp.arange(8 * 128, dtype=jnp.float32).reshape(8, 128)
        y = np.asarray(jax.block_until_ready(
            pl.pallas_call(k, out_shape=jax.ShapeDtypeStruct((8, 128), jnp.float32))(x)))
        xn = np.asarray(x)
        if np.array_equal(y, np.roll(xn, 1, axis=1)):
            _ROLL_MODE = 1
        elif np.array_equal(y, np.roll(xn, -1, axis=1)):
            _ROLL_MODE = -1
        else:
            _ROLL_MODE = 0
    except Exception:
        _ROLL_MODE = 0
    return _ROLL_MODE


def _vmem_limit_bytes():
    """Generation-aware VMEM limit: ~112 MiB on v5e/v6e (128 MiB), ~56 MiB on v7x (64 MiB)."""
    cap = 128 * 1024 * 1024
    try:
        cap = int(getattr(pltpu.get_tpu_info(), "vmem_capacity_bytes", cap))
    except Exception:
        pass
    return int(min(cap - cap // 8, 112 * 1024 * 1024))


# ----------------------------------------------------------------------------
# Fused Pallas kernel factory
# ----------------------------------------------------------------------------
def make_up_forward(x1_shape, x2_shape, out_channels):
    """Builds the fused forward for Up(bilinear=True) at static shapes (NCHW in/out)."""
    N, C1, H1, W1 = x1_shape
    N2, C2, H2, W2 = x2_shape
    assert N == N2
    Cin = C1 + C2
    Cmid = Cin // 2
    Cout = out_channels
    HW = H2 * W2
    diffY, diffX = H2 - 2 * H1, W2 - 2 * W1
    assert diffY >= 0 and diffX >= 0, "x2 must be at least as large as upsampled x1"

    uwT = jnp.asarray(_w_pass_matrix(W1, W2, diffX), jnp.bfloat16)   # (W1, W2)
    masks = jnp.asarray(_conv_border_masks(H2, W2), jnp.bfloat16)    # (9, HW)
    h_terms = _h_row_terms(H1, H2, diffY)
    roll_mode = _get_roll_mode()

    def _shift_lanes(x, s):
        """y[:, i] = x[:, (i + s) % HW]; wrapped positions are masked out afterwards."""
        k = s % HW
        if k == 0:
            return x
        if roll_mode == 1:
            return pltpu.roll(x, HW - k, 1)
        if roll_mode == -1:
            return pltpu.roll(x, k, 1)
        return jnp.concatenate([x[:, k:], x[:, :k]], axis=1)

    def kernel(x1_ref, x2_ref, uwT_ref, mask_ref, w1_ref, b1_ref, w2_ref, b2_ref, out_ref):
        def conv_bn_relu(x_bf, w_ref, b_ref):
            """3x3 'same' conv + folded BN + ReLU via 9 accumulating per-tap matmuls."""
            acc = None
            for t in range(9):
                kh, kw = divmod(t, 3)
                s = (kh - 1) * W2 + (kw - 1)            # flat-index source offset
                xt = _shift_lanes(x_bf, s)
                if t != 4:                              # center tap: all-ones mask
                    xt = xt * mask_ref[t:t + 1, :]
                p = jnp.dot(w_ref[t], xt, preferred_element_type=jnp.float32)
                acc = p if acc is None else acc + p
            return jnp.maximum(acc + b_ref[...], 0.0)   # (Co, HW) f32

        # 1) upsample, W direction: one MXU matmul; F.pad columns folded into uwT.
        xw = jnp.dot(x1_ref[0], uwT_ref[...],
                     preferred_element_type=jnp.float32)             # (H1*C1, W2) f32

        # 2) upsample H direction + F.pad rows + flatten to (C1, H2*W2): each output
        #    row is a weighted sum of <=2 input row-blocks (trace-time constants).
        zrow = jnp.zeros((C1, W2), jnp.bfloat16)
        pieces = []
        for terms in h_terms:
            if not terms:
                pieces.append(zrow)
                continue
            r = None
            for h1, w in terms:
                blk = xw[h1 * C1:(h1 + 1) * C1, :]
                term = blk if w == 1.0 else blk * w
                r = term if r is None else r + term
            pieces.append(r.astype(jnp.bfloat16))
        up_flat = jnp.concatenate(pieces, axis=1)                    # (C1, HW) bf16

        # 3) channel concat torch.cat([x2, x1_up], dim=1), channels-first flat spatial.
        xin = jnp.concatenate([x2_ref[0], up_flat], axis=0)          # (Cin, HW) bf16

        # 4) conv1 + folded BN + ReLU; mid activation never leaves VMEM.
        y = conv_bn_relu(xin, w1_ref, b1_ref).astype(jnp.bfloat16)   # (Cmid, HW)
        # 5) conv2 + folded BN + ReLU.
        z = conv_bn_relu(y, w2_ref, b2_ref)                          # (Cout, HW) f32

        # 6) lane-dense store: last written dim is H2*W2.
        out_ref[0] = z.astype(out_ref.dtype)

    fused = pl.pallas_call(
        kernel,
        out_shape=jax.ShapeDtypeStruct((N, Cout, HW), jnp.float32),
        grid=(N,),
        in_specs=[
            pl.BlockSpec((1, H1 * C1, W1), lambda n: (n, 0, 0)),   # x1, h-major rows
            pl.BlockSpec((1, C2, HW), lambda n: (n, 0, 0)),        # x2, flat spatial
            pl.BlockSpec((W1, W2), lambda n: (0, 0)),              # upsample W matrix
            pl.BlockSpec((9, HW), lambda n: (0, 0)),               # border masks
            pl.BlockSpec((9, Cmid, Cin), lambda n: (0, 0, 0)),     # conv1 taps (BN-folded)
            pl.BlockSpec((Cmid, 1), lambda n: (0, 0)),             # conv1 bias
            pl.BlockSpec((9, Cout, Cmid), lambda n: (0, 0, 0)),    # conv2 taps (BN-folded)
            pl.BlockSpec((Cout, 1), lambda n: (0, 0)),             # conv2 bias
        ],
        out_specs=pl.BlockSpec((1, Cout, HW), lambda n: (n, 0, 0)),
        compiler_params=pltpu.CompilerParams(
            dimension_semantics=("parallel",),
            vmem_limit_bytes=_vmem_limit_bytes(),
        ),
    )

    def forward(x1_nchw, x2_nchw, params, eps=1e-5):
        # Fold eval-mode BatchNorm: scale into the conv weights, shift into a bias.
        s1 = params["bn1_gamma"] / jnp.sqrt(params["bn1_var"] + eps)
        b1 = (params["bn1_beta"] - params["bn1_mean"] * s1).reshape(Cmid, 1)
        s2 = params["bn2_gamma"] / jnp.sqrt(params["bn2_var"] + eps)
        b2 = (params["bn2_beta"] - params["bn2_mean"] * s2).reshape(Cout, 1)
        # (Co, Ci, 3, 3) -> per-tap (9, Co, Ci), tap index t = kh*3 + kw.
        w1t = jnp.transpose(params["w1"] * s1[:, None, None, None],
                            (2, 3, 0, 1)).reshape(9, Cmid, Cin)
        w2t = jnp.transpose(params["w2"] * s2[:, None, None, None],
                            (2, 3, 0, 1)).reshape(9, Cout, Cmid)
        # x1 rows ordered h-major so the in-kernel H pass uses contiguous row blocks.
        x1h = jnp.transpose(x1_nchw, (0, 2, 1, 3)).reshape(N, H1 * C1, W1)
        out_flat = fused(
            x1h.astype(jnp.bfloat16),
            x2_nchw.reshape(N, C2, HW).astype(jnp.bfloat16),
            uwT, masks,
            w1t.astype(jnp.bfloat16), b1.astype(jnp.float32),
            w2t.astype(jnp.bfloat16), b2.astype(jnp.float32),
        )
        return out_flat.reshape(N, Cout, H2, W2)   # NCHW directly; reshape is free.

    return forward


# ----------------------------------------------------------------------------
# Pure-JAX reference (f32) for validation
# ----------------------------------------------------------------------------
def reference_up_forward(x1, x2, params, eps=1e-5):
    N, C1, H1, W1 = x1.shape
    uh = jnp.asarray(_bilinear_matrix(H1, 2 * H1))
    uw = jnp.asarray(_bilinear_matrix(W1, 2 * W1))
    up = jnp.einsum("ph,nchw,qw->ncpq", uh, x1, uw)
    diffY = x2.shape[2] - up.shape[2]
    diffX = x2.shape[3] - up.shape[3]
    up = jnp.pad(up, ((0, 0), (0, 0),
                      (diffY // 2, diffY - diffY // 2),
                      (diffX // 2, diffX - diffX // 2)))
    x = jnp.concatenate([x2, up], axis=1)

    def conv_bn_relu(x, w, g, b, m, v):
        y = jax.lax.conv_general_dilated(x, w, (1, 1), ((1, 1), (1, 1)),
                                         dimension_numbers=("NCHW", "OIHW", "NCHW"))
        s = g / jnp.sqrt(v + eps)
        y = y * s[None, :, None, None] + (b - m * s)[None, :, None, None]
        return jnp.maximum(y, 0.0)

    y = conv_bn_relu(x, params["w1"], params["bn1_gamma"], params["bn1_beta"],
                     params["bn1_mean"], params["bn1_var"])
    return conv_bn_relu(y, params["w2"], params["bn2_gamma"], params["bn2_beta"],
                        params["bn2_mean"], params["bn2_var"])


def init_params(key, in_channels, out_channels):
    """Up(in_channels, out_channels, bilinear=True) parameters (eval-mode BN)."""
    mid_channels = in_channels // 2
    k1, k2 = jax.random.split(key)
    return {
        "w1": jax.random.normal(k1, (mid_channels, in_channels, 3, 3), jnp.float32) * 0.1,
        "w2": jax.random.normal(k2, (out_channels, mid_channels, 3, 3), jnp.float32) * 0.1,
        "bn1_gamma": jnp.ones((mid_channels,), jnp.float32),
        "bn1_beta": jnp.zeros((mid_channels,), jnp.float32),
        "bn1_mean": jnp.zeros((mid_channels,), jnp.float32),
        "bn1_var": jnp.ones((mid_channels,), jnp.float32),
        "bn2_gamma": jnp.ones((out_channels,), jnp.float32),
        "bn2_beta": jnp.zeros((out_channels,), jnp.float32),
        "bn2_mean": jnp.zeros((out_channels,), jnp.float32),
        "bn2_var": jnp.ones((out_channels,), jnp.float32),
    }


if __name__ == "__main__":
    # Up(in_channels=8, out_channels=4, bilinear=True)
    # x1: low-res input (N, in/2, H, W); x2: high-res skip (N, in/2, 2H, 2W)
    N, in_channels, out_channels = 2, 8, 4
    H1 = W1 = 8

    key = jax.random.PRNGKey(0)
    kx1, kx2, kp = jax.random.split(key, 3)
    x1 = jax.random.normal(kx1, (N, in_channels // 2, H1, W1), jnp.float32)          # (2, 4, 8, 8)
    x2 = jax.random.normal(kx2, (N, in_channels // 2, 2 * H1, 2 * W1), jnp.float32)  # (2, 4, 16, 16)
    params = init_params(kp, in_channels, out_channels)

    forward = make_up_forward(x1.shape, x2.shape, out_channels)
    out = jax.block_until_ready(forward(x1, x2, params))

    assert out.shape == (N, out_channels, 2 * H1, 2 * W1), out.shape
    assert bool(jnp.all(jnp.isfinite(out)))

    ref = jax.block_until_ready(reference_up_forward(x1, x2, params))
    np.testing.assert_allclose(np.asarray(out), np.asarray(ref), rtol=4e-2, atol=4e-2)

    print("KERNEL_OK")
</pallas_src>

<mosaic_0001>
module attributes {stable_mosaic.version = 11 : i64} {
  func.func @k(%arg0: memref<8x128xf32, #tpu.memory_space<vmem>>, %arg1: memref<8x128xf32, #tpu.memory_space<vmem>>) attributes {dimension_semantics = [], scalar_prefetch = 0 : i64, scratch_operands = 0 : i64, tpu.core_type = #tpu.core_type<tc>} {
    %c0 = arith.constant 0 : index
    %c0_0 = arith.constant 0 : index
    %0 = vector.load %arg0[%c0, %c0_0] : memref<8x128xf32, #tpu.memory_space<vmem>>, vector<8x128xf32>
    %c1_i32 = arith.constant 1 : i32
    %1 = tpu.dynamic_rotate %0 by %c1_i32 dim 1 : vector<8x128xf32>, i32 -> vector<8x128xf32>
    %c0_1 = arith.constant 0 : index
    %c0_2 = arith.constant 0 : index
    %2 = vector.load %arg1[%c0_1, %c0_2] : memref<8x128xf32, #tpu.memory_space<vmem>>, vector<8x128xf32>
    tpu.vector_store %arg1[%c0_1, %c0_2], %1 {strides = array<i32>} : memref<8x128xf32, #tpu.memory_space<vmem>>, vector<8x128xf32>,
    return
  }
}

module attributes {stable_mosaic.version = 11 : i64} {
  func.func @kernel(%arg0: i32, %arg1: memref<1x32x8xbf16, #tpu.memory_space<vmem>>, %arg2: memref<1x4x256xbf16, #tpu.memory_space<vmem>>, %arg3: memref<8x16xbf16, #tpu.memory_space<vmem>>, %arg4: memref<9x256xbf16, #tpu.memory_space<vmem>>, %arg5: memref<9x4x8xbf16, #tpu.memory_space<vmem>>, %arg6: memref<4x1xf32, #tpu.memory_space<vmem>>, %arg7: memref<9x4x4xbf16, #tpu.memory_space<vmem>>, %arg8: memref<4x1xf32, #tpu.memory_space<vmem>>, %arg9: memref<1x4x256xf32, #tpu.memory_space<vmem>>) attributes {dimension_semantics = [#tpu.dimension_semantics<parallel>], iteration_bounds = array<i64: 2>, scalar_prefetch = 0 : i64, scratch_operands = 0 : i64, tpu.core_type = #tpu.core_type<tc>, window_params = [{transform_indices = @transform_0, window_bounds = array<i64: 1, 32, 8>}, {transform_indices = @transform_1, window_bounds = array<i64: 1, 4, 256>}, {pipeline_mode = #tpu.pipeline_mode<synchronous>, transform_indices = @transform_2, window_bounds = array<i64: 8, 16>}, {pipeline_mode = #tpu.pipeline_mode<synchronous>, transform_indices = @transform_3, window_bounds = array<i64: 9, 256>}, {pipeline_mode = #tpu.pipeline_mode<synchronous>, transform_indices = @transform_4, window_bounds = array<i64: 9, 4, 8>}, {pipeline_mode = #tpu.pipeline_mode<synchronous>, transform_indices = @transform_5, window_bounds = array<i64: 4, 1>}, {pipeline_mode = #tpu.pipeline_mode<synchronous>, transform_indices = @transform_6, window_bounds = array<i64: 9, 4, 4>}, {pipeline_mode = #tpu.pipeline_mode<synchronous>, transform_indices = @transform_7, window_bounds = array<i64: 4, 1>}, {transform_indices = @transform_8, window_bounds = array<i64: 1, 4, 256>}]} {
    %c0 = arith.constant 0 : index
    %c0_0 = arith.constant 0 : index
    %c0_1 = arith.constant 0 : index
    %0 = vector.load %arg1[%c0, %c0_0, %c0_1] : memref<1x32x8xbf16, #tpu.memory_space<vmem>>, vector<1x32x8xbf16>
    %1 = vector.shape_cast %0 : vector<1x32x8xbf16> to vector<32x8xbf16>
    %c0_2 = arith.constant 0 : index
    %c0_3 = arith.constant 0 : index
    %2 = vector.load %arg3[%c0_2, %c0_3] : memref<8x16xbf16, #tpu.memory_space<vmem>>, vector<8x16xbf16>
    %cst = arith.constant dense<0.000000e+00> : vector<32x16xf32>
    %3 = tpu.matmul %1, %2, %cst {dimension_numbers = #tpu.dot_dimension_numbers<[1], [0], [0], [1], [0, 0, 1, 1], [], []>} : vector<32x8xbf16>, vector<8x16xbf16>, vector<32x16xf32> -> vector<32x16xf32>
    %4 = vector.extract_strided_slice %3 {offsets = [0, 0], sizes = [4, 16], strides = [1, 1]} : vector<32x16xf32> to vector<4x16xf32>
    %5 = arith.truncf %4 : vector<4x16xf32> to vector<4x16xbf16>
    %6 = vector.extract_strided_slice %3 {offsets = [0, 0], sizes = [4, 16], strides = [1, 1]} : vector<32x16xf32> to vector<4x16xf32>
    %cst_4 = arith.constant 0.533333302 : f32
    %7 = vector.broadcast %cst_4 : f32 to vector<4x16xf32>
    %8 = arith.mulf %6, %7 : vector<4x16xf32>
    %9 = vector.extract_strided_slice %3 {offsets = [4, 0], sizes = [4, 16], strides = [1, 1]} : vector<32x16xf32> to vector<4x16xf32>
    %cst_5 = arith.constant 0.466666669 : f32
    %10 = vector.broadcast %cst_5 : f32 to vector<4x16xf32>
    %11 = arith.mulf %9, %10 : vector<4x16xf32>
    %12 = arith.addf %8, %11 : vector<4x16xf32>
    %13 = arith.truncf %12 : vector<4x16xf32> to vector<4x16xbf16>
    %14 = vector.extract_strided_slice %3 {offsets = [0, 0], sizes = [4, 16], strides = [1, 1]} : vector<32x16xf32> to vector<4x16xf32>
    %cst_6 = arith.constant 0.0666666627 : f32
    %15 = vector.broadcast %cst_6 : f32 to vector<4x16xf32>
    %16 = arith.mulf %14, %15 : vector<4x16xf32>
    %17 = vector.extract_strided_slice %3 {offsets = [4, 0], sizes = [4, 16], strides = [1, 1]} : vector<32x16xf32> to vector<4x16xf32>
    %cst_7 = arith.constant 0.933333337 : f32
    %18 = vector.broadcast %cst_7 : f32 to vector<4x16xf32>
    %19 = arith.mulf %17, %18 : vector<4x16xf32>
    %20 = arith.addf %16, %19 : vector<4x16xf32>
    %21 = arith.truncf %20 : vector<4x16xf32> to vector<4x16xbf16>
    %22 = vector.extract_strided_slice %3 {offsets = [4, 0], sizes = [4, 16], strides = [1, 1]} : vector<32x16xf32> to vector<4x16xf32>
    %cst_8 = arith.constant 6.000000e-01 : f32
    %23 = vector.broadcast %cst_8 : f32 to vector<4x16xf32>
    %24 = arith.mulf %22, %23 : vector<4x16xf32>
    %25 = vector.extract_strided_slice %3 {offsets = [8, 0], sizes = [4, 16], strides = [1, 1]} : vector<32x16xf32> to vector<4x16xf32>
    %cst_9 = arith.constant 4.000000e-01 : f32
    %26 = vector.broadcast %cst_9 : f32 to vector<4x16xf32>
    %27 = arith.mulf %25, %26 : vector<4x16xf32>
    %28 = arith.addf %24, %27 : vector<4x16xf32>
    %29 = arith.truncf %28 : vector<4x16xf32> to vector<4x16xbf16>
    %30 = vector.extract_strided_slice %3 {offsets = [4, 0], sizes = [4, 16], strides = [1, 1]} : vector<32x16xf32> to vector<4x16xf32>
    %cst_10 = arith.constant 0.133333325 : f32
    %31 = vector.broadcast %cst_10 : f32 to vector<4x16xf32>
    %32 = arith.mulf %30, %31 : vector<4x16xf32>
    %33 = vector.extract_strided_slice %3 {offsets = [8, 0], sizes = [4, 16], strides = [1, 1]} : vector<32x16xf32> to vector<4x16xf32>
    %cst_11 = arith.constant 0.866666674 : f32
    %34 = vector.broadcast %cst_11 : f32 to vector<4x16xf32>
    %35 = arith.mulf %33, %34 : vector<4x16xf32>
    %36 = arith.addf %32, %35 : vector<4x16xf32>
    %37 = arith.truncf %36 : vector<4x16xf32> to vector<4x16xbf16>
    %38 = vector.extract_strided_slice %3 {offsets = [8, 0], sizes = [4, 16], strides = [1, 1]} : vector<32x16xf32> to vector<4x16xf32>
    %cst_12 = arith.constant 0.666666627 : f32
    %39 = vector.broadcast %cst_12 : f32 to vector<4x16xf32>
    %40 = arith.mulf %38, %39 : vector<4x16xf32>
    %41 = vector.extract_strided_slice %3 {offsets = [12, 0], sizes = [4, 16], strides = [1, 1]} : vector<32x16xf32> to vector<4x16xf32>
    %cst_13 = arith.constant 0.333333343 : f32
    %42 = vector.broadcast %cst_13 : f32 to vector<4x16xf32>
    %43 = arith.mulf %41, %42 : vector<4x16xf32>
    %44 = arith.addf %40, %43 : vector<4x16xf32>
    %45 = arith.truncf %44 : vector<4x16xf32> to vector<4x16xbf16>
    %46 = vector.extract_strided_slice %3 {offsets = [8, 0], sizes = [4, 16], strides = [1, 1]} : vector<32x16xf32> to vector<4x16xf32>
    %cst_14 = arith.constant 0.199999988 : f32
    %47 = vector.broadcast %cst_14 : f32 to vector<4x16xf32>
    %48 = arith.mulf %46, %47 : vector<4x16xf32>
    %49 = vector.extract_strided_slice %3 {offsets = [12, 0], sizes = [4, 16], strides = [1, 1]} : vector<32x16xf32> to vector<4x16xf32>
    %cst_15 = arith.constant 8.000000e-01 : f32
    %50 = vector.broadcast %cst_15 : f32 to vector<4x16xf32>
    %51 = arith.mulf %49, %50 : vector<4x16xf32>
    %52 = arith.addf %48, %51 : vector<4x16xf32>
    %53 = arith.truncf %52 : vector<4x16xf32> to vector<4x16xbf16>
    %54 = vector.extract_strided_slice %3 {offsets = [12, 0], sizes = [4, 16], strides = [1, 1]} : vector<32x16xf32> to vector<4x16xf32>
    %cst_16 = arith.constant 0.733333349 : f32
    %55 = vector.broadcast %cst_16 : f32 to vector<4x16xf32>
    %56 = arith.mulf %54, %55 : vector<4x16xf32>
    %57 = vector.extract_strided_slice %3 {offsets = [16, 0], sizes = [4, 16], strides = [1, 1]} : vector<32x16xf32> to vector<4x16xf32>
    %cst_17 = arith.constant 0.266666681 : f32
    %58 = vector.broadcast %cst_17 : f32 to vector<4x16xf32>
    %59 = arith.mulf %57, %58 : vector<4x16xf32>
    %60 = arith.addf %56, %59 : vector<4x16xf32>
    %61 = arith.truncf %60 : vector<4x16xf32> to vector<4x16xbf16>
    %62 = vector.extract_strided_slice %3 {offsets = [12, 0], sizes = [4, 16], strides = [1, 1]} : vector<32x16xf32> to vector<4x16xf32>
    %cst_18 = arith.constant 0.266666651 : f32
    %63 = vector.broadcast %cst_18 : f32 to vector<4x16xf32>
    %64 = arith.mulf %62, %63 : vector<4x16xf32>
    %65 = vector.extract_strided_slice %3 {offsets = [16, 0], sizes = [4, 16], strides = [1, 1]} : vector<32x16xf32> to vector<4x16xf32>
    %cst_19 = arith.constant 0.733333349 : f32
    %66 = vector.broadcast %cst_19 : f32 to vector<4x16xf32>
    %67 = arith.mulf %65, %66 : vector<4x16xf32>
    %68 = arith.addf %64, %67 : vector<4x16xf32>
    %69 = arith.truncf %68 : vector<4x16xf32> to vector<4x16xbf16>
    %70 = vector.extract_strided_slice %3 {offsets = [16, 0], sizes = [4, 16], strides = [1, 1]} : vector<32x16xf32> to vector<4x16xf32>
    %cst_20 = arith.constant 8.000000e-01 : f32
    %71 = vector.broadcast %cst_20 : f32 to vector<4x16xf32>
    %72 = arith.mulf %70, %71 : vector<4x16xf32>
    %73 = vector.extract_strided_slice %3 {offsets = [20, 0], sizes = [4, 16], strides = [1, 1]} : vector<32x16xf32> to vector<4x16xf32>
    %cst_21 = arith.constant 2.000000e-01 : f32
    %74 = vector.broadcast %cst_21 : f32 to vector<4x16xf32>
    %75 = arith.mulf %73, %74 : vector<4x16xf32>
    %76 = arith.addf %72, %75 : vector<4x16xf32>
    %77 = arith.truncf %76 : vector<4x16xf32> to vector<4x16xbf16>
    %78 = vector.extract_strided_slice %3 {offsets = [16, 0], sizes = [4, 16], strides = [1, 1]} : vector<32x16xf32> to vector<4x16xf32>
    %cst_22 = arith.constant 0.333333313 : f32
    %79 = vector.broadcast %cst_22 : f32 to vector<4x16xf32>
    %80 = arith.mulf %78, %79 : vector<4x16xf32>
    %81 = vector.extract_strided_slice %3 {offsets = [20, 0], sizes = [4, 16], strides = [1, 1]} : vector<32x16xf32> to vector<4x16xf32>
    %cst_23 = arith.constant 0.666666686 : f32
    %82 = vector.broadcast %cst_23 : f32 to vector<4x16xf32>
    %83 = arith.mulf %81, %82 : vector<4x16xf32>
    %84 = arith.addf %80, %83 : vector<4x16xf32>
    %85 = arith.truncf %84 : vector<4x16xf32> to vector<4x16xbf16>
    %86 = vector.extract_strided_slice %3 {offsets = [20, 0], sizes = [4, 16], strides = [1, 1]} : vector<32x16xf32> to vector<4x16xf32>
    %cst_24 = arith.constant 0.866666674 : f32
    %87 = vector.broadcast %cst_24 : f32 to vector<4x16xf32>
    %88 = arith.mulf %86, %87 : vector<4x16xf32>
    %89 = vector.extract_strided_slice %3 {offsets = [24, 0], sizes = [4, 16], strides = [1, 1]} : vector<32x16xf32> to vector<4x16xf32>
    %cst_25 = arith.constant 0.13333334 : f32
    %90 = vector.broadcast %cst_25 : f32 to vector<4x16xf32>
    %91 = arith.mulf %89, %90 : vector<4x16xf32>
    %92 = arith.addf %88, %91 : vector<4x16xf32>
    %93 = arith.truncf %92 : vector<4x16xf32> to vector<4x16xbf16>
    %94 = vector.extract_strided_slice %3 {offsets = [20, 0], sizes = [4, 16], strides = [1, 1]} : vector<32x16xf32> to vector<4x16xf32>
    %cst_26 = arith.constant 0.399999976 : f32
    %95 = vector.broadcast %cst_26 : f32 to vector<4x16xf32>
    %96 = arith.mulf %94, %95 : vector<4x16xf32>
    %97 = vector.extract_strided_slice %3 {offsets = [24, 0], sizes = [4, 16], strides = [1, 1]} : vector<32x16xf32> to vector<4x16xf32>
    %cst_27 = arith.constant 6.000000e-01 : f32
    %98 = vector.broadcast %cst_27 : f32 to vector<4x16xf32>
    %99 = arith.mulf %97, %98 : vector<4x16xf32>
    %100 = arith.addf %96, %99 : vector<4x16xf32>
    %101 = arith.truncf %100 : vector<4x16xf32> to vector<4x16xbf16>
    %102 = vector.extract_strided_slice %3 {offsets = [24, 0], sizes = [4, 16], strides = [1, 1]} : vector<32x16xf32> to vector<4x16xf32>
    %cst_28 = arith.constant 0.933333337 : f32
    %103 = vector.broadcast %cst_28 : f32 to vector<4x16xf32>
    %104 = arith.mulf %102, %103 : vector<4x16xf32>
    %105 = vector.extract_strided_slice %3 {offsets = [28, 0], sizes = [4, 16], strides = [1, 1]} : vector<32x16xf32> to vector<4x16xf32>
    %cst_29 = arith.constant 0.0666666701 : f32
    %106 = vector.broadcast %cst_29 : f32 to vector<4x16xf32>
    %107 = arith.mulf %105, %106 : vector<4x16xf32>
    %108 = arith.addf %104, %107 : vector<4x16xf32>
    %109 = arith.truncf %108 : vector<4x16xf32> to vector<4x16xbf16>
    %110 = vector.extract_strided_slice %3 {offsets = [24, 0], sizes = [4, 16], strides = [1, 1]} : vector<32x16xf32> to vector<4x16xf32>
    %cst_30 = arith.constant 0.466666639 : f32
    %111 = vector.broadcast %cst_30 : f32 to vector<4x16xf32>
    %112 = arith.mulf %110, %111 : vector<4x16xf32>
    %113 = vector.extract_strided_slice %3 {offsets = [28, 0], sizes = [4, 16], strides = [1, 1]} : vector<32x16xf32> to vector<4x16xf32>
    %cst_31 = arith.constant 0.533333361 : f32
    %114 = vector.broadcast %cst_31 : f32 to vector<4x16xf32>
    %115 = arith.mulf %113, %114 : vector<4x16xf32>
    %116 = arith.addf %112, %115 : vector<4x16xf32>
    %117 = arith.truncf %116 : vector<4x16xf32> to vector<4x16xbf16>
    %118 = vector.extract_strided_slice %3 {offsets = [28, 0], sizes = [4, 16], strides = [1, 1]} : vector<32x16xf32> to vector<4x16xf32>
    %119 = arith.truncf %118 : vector<4x16xf32> to vector<4x16xbf16>
    %120 = tpu.concatenate %5, %13, %21, %29, %37, %45, %53, %61, %69, %77, %85, %93, %101, %109, %117, %119 in 1 : vector<4x16xbf16>, vector<4x16xbf16>, vector<4x16xbf16>, vector<4x16xbf16>, vector<4x16xbf16>, vector<4x16xbf16>, vector<4x16xbf16>, vector<4x16xbf16>, vector<4x16xbf16>, vector<4x16xbf16>, vector<4x16xbf16>, vector<4x16xbf16>, vector<4x16xbf16>, vector<4x16xbf16>, vector<4x16xbf16>, vector<4x16xbf16> -> vector<4x256xbf16>
    %c0_32 = arith.constant 0 : index
    %c0_33 = arith.constant 0 : index
    %c0_34 = arith.constant 0 : index
    %121 = vector.load %arg2[%c0_32, %c0_33, %c0_34] : memref<1x4x256xbf16, #tpu.memory_space<vmem>>, vector<1x4x256xbf16>
    %122 = vector.shape_cast %121 : vector<1x4x256xbf16> to vector<4x256xbf16>
    %123 = tpu.concatenate %122, %120 in 0 : vector<4x256xbf16>, vector<4x256xbf16> -> vector<8x256xbf16>
    %124 = vector.extract_strided_slice %123 {offsets = [0, 239], sizes = [8, 17], strides = [1, 1]} : vector<8x256xbf16> to vector<8x17xbf16>
    %125 = vector.extract_strided_slice %123 {offsets = [0, 0], sizes = [8, 239], strides = [1, 1]} : vector<8x256xbf16> to vector<8x239xbf16>
    %126 = tpu.concatenate %124, %125 in 1 : vector<8x17xbf16>, vector<8x239xbf16> -> vector<8x256xbf16>
    %c0_35 = arith.constant 0 : index
    %c0_36 = arith.constant 0 : index
    %127 = vector.load %arg4[%c0_35, %c0_36] : memref<9x256xbf16, #tpu.memory_space<vmem>>, vector<1x256xbf16>
    %128 = vector.broadcast %127 : vector<1x256xbf16> to vector<8x256xbf16>
    %129 = arith.mulf %126, %128 : vector<8x256xbf16>
    %c0_37 = arith.constant 0 : index
    %c0_38 = arith.constant 0 : index
    %c0_39 = arith.constant 0 : index
    %130 = vector.load %arg5[%c0_37, %c0_38, %c0_39] : memref<9x4x8xbf16, #tpu.memory_space<vmem>>, vector<1x4x8xbf16>
    %131 = vector.shape_cast %130 : vector<1x4x8xbf16> to vector<4x8xbf16>
    %cst_40 = arith.constant dense<0.000000e+00> : vector<4x256xf32>
    %132 = tpu.matmul %131, %129, %cst_40 {dimension_numbers = #tpu.dot_dimension_numbers<[1], [0], [0], [1], [0, 0, 1, 1], [], []>} : vector<4x8xbf16>, vector<8x256xbf16>, vector<4x256xf32> -> vector<4x256xf32>
    %133 = vector.extract_strided_slice %123 {offsets = [0, 240], sizes = [8, 16], strides = [1, 1]} : vector<8x256xbf16> to vector<8x16xbf16>
    %134 = vector.extract_strided_slice %123 {offsets = [0, 0], sizes = [8, 240], strides = [1, 1]} : vector<8x256xbf16> to vector<8x240xbf16>
    %135 = tpu.concatenate %133, %134 in 1 : vector<8x16xbf16>, vector<8x240xbf16> -> vector<8x256xbf16>
    %c1 = arith.constant 1 : index
    %c0_41 = arith.constant 0 : index
    %136 = vector.load %arg4[%c1, %c0_41] : memref<9x256xbf16, #tpu.memory_space<vmem>>, vector<1x256xbf16>
    %137 = vector.broadcast %136 : vector<1x256xbf16> to vector<8x256xbf16>
    %138 = arith.mulf %135, %137 : vector<8x256xbf16>
    %c1_42 = arith.constant 1 : index
    %c0_43 = arith.constant 0 : index
    %c0_44 = arith.constant 0 : index
    %139 = vector.load %arg5[%c1_42, %c0_43, %c0_44] : memref<9x4x8xbf16, #tpu.memory_space<vmem>>, vector<1x4x8xbf16>
    %140 = vector.shape_cast %139 : vector<1x4x8xbf16> to vector<4x8xbf16>
    %cst_45 = arith.constant dense<0.000000e+00> : vector<4x256xf32>
    %141 = tpu.matmul %140, %138, %cst_45 {dimension_numbers = #tpu.dot_dimension_numbers<[1], [0], [0], [1], [0, 0, 1, 1], [], []>} : vector<4x8xbf16>, vector<8x256xbf16>, vector<4x256xf32> -> vector<4x256xf32>
    %142 = arith.addf %132, %141 : vector<4x256xf32>
    %143 = vector.extract_strided_slice %123 {offsets = [0, 241], sizes = [8, 15], strides = [1, 1]} : vector<8x256xbf16> to vector<8x15xbf16>
    %144 = vector.extract_strided_slice %123 {offsets = [0, 0], sizes = [8, 241], strides = [1, 1]} : vector<8x256xbf16> to vector<8x241xbf16>
    %145 = tpu.concatenate %143, %144 in 1 : vector<8x15xbf16>, vector<8x241xbf16> -> vector<8x256xbf16>
    %c2 = arith.constant 2 : index
    %c0_46 = arith.constant 0 : index
    %146 = vector.load %arg4[%c2, %c0_46] : memref<9x256xbf16, #tpu.memory_space<vmem>>, vector<1x256xbf16>
    %147 = vector.broadcast %146 : vector<1x256xbf16> to vector<8x256xbf16>
    %148 = arith.mulf %145, %147 : vector<8x256xbf16>
    %c2_47 = arith.constant 2 : index
    %c0_48 = arith.constant 0 : index
    %c0_49 = arith.constant 0 : index
    %149 = vector.load %arg5[%c2_47, %c0_48, %c0_49] : memref<9x4x8xbf16, #tpu.memory_space<vmem>>, vector<1x4x8xbf16>
    %150 = vector.shape_cast %149 : vector<1x4x8xbf16> to vector<4x8xbf16>
    %cst_50 = arith.constant dense<0.000000e+00> : vector<4x256xf32>
    %151 = tpu.matmul %150, %148, %cst_50 {dimension_numbers = #tpu.dot_dimension_numbers<[1], [0], [0], [1], [0, 0, 1, 1], [], []>} : vector<4x8xbf16>, vector<8x256xbf16>, vector<4x256xf32> -> vector<4x256xf32>
    %152 = arith.addf %142, %151 : vector<4x256xf32>
    %153 = vector.extract_strided_slice %123 {offsets = [0, 255], sizes = [8, 1], strides = [1, 1]} : vector<8x256xbf16> to vector<8x1xbf16>
    %154 = vector.extract_strided_slice %123 {offsets = [0, 0], sizes = [8, 255], strides = [1, 1]} : vector<8x256xbf16> to vector<8x255xbf16>
    %155 = tpu.concatenate %153, %154 in 1 : vector<8x1xbf16>, vector<8x255xbf16> -> vector<8x256xbf16>
    %c3 = arith.constant 3 : index
    %c0_51 = arith.constant 0 : index
    %156 = vector.load %arg4[%c3, %c0_51] : memref<9x256xbf16, #tpu.memory_space<vmem>>, vector<1x256xbf16>
    %157 = vector.broadcast %156 : vector<1x256xbf16> to vector<8x256xbf16>
    %158 = arith.mulf %155, %157 : vector<8x256xbf16>
    %c3_52 = arith.constant 3 : index
    %c0_53 = arith.constant 0 : index
    %c0_54 = arith.constant 0 : index
    %159 = vector.load %arg5[%c3_52, %c0_53, %c0_54] : memref<9x4x8xbf16, #tpu.memory_space<vmem>>, vector<1x4x8xbf16>
    %160 = vector.shape_cast %159 : vector<1x4x8xbf16> to vector<4x8xbf16>
    %cst_55 = arith.constant dense<0.000000e+00> : vector<4x256xf32>
    %161 = tpu.matmul %160, %158, %cst_55 {dimension_numbers = #tpu.dot_dimension_numbers<[1], [0], [0], [1], [0, 0, 1, 1], [], []>} : vector<4x8xbf16>, vector<8x256xbf16>, vector<4x256xf32> -> vector<4x256xf32>
    %162 = arith.addf %152, %161 : vector<4x256xf32>
    %c4 = arith.constant 4 : index
    %c0_56 = arith.constant 0 : index
    %c0_57 = arith.constant 0 : index
    %163 = vector.load %arg5[%c4, %c0_56, %c0_57] : memref<9x4x8xbf16, #tpu.memory_space<vmem>>, vector<1x4x8xbf16>
    %164 = vector.shape_cast %163 : vector<1x4x8xbf16> to vector<4x8xbf16>
    %cst_58 = arith.constant dense<0.000000e+00> : vector<4x256xf32>
    %165 = tpu.matmul %164, %123, %cst_58 {dimension_numbers = #tpu.dot_dimension_numbers<[1], [0], [0], [1], [0, 0, 1, 1], [], []>} : vector<4x8xbf16>, vector<8x256xbf16>, vector<4x256xf32> -> vector<4x256xf32>
    %166 = arith.addf %162, %165 : vector<4x256xf32>
    %167 = vector.extract_strided_slice %123 {offsets = [0, 1], sizes = [8, 255], strides = [1, 1]} : vector<8x256xbf16> to vector<8x255xbf16>
    %168 = vector.extract_strided_slice %123 {offsets = [0, 0], sizes = [8, 1], strides = [1, 1]} : vector<8x256xbf16> to vector<8x1xbf16>
    %169 = tpu.concatenate %167, %168 in 1 : vector<8x255xbf16>, vector<8x1xbf16> -> vector<8x256xbf16>
    %c5 = arith.constant 5 : index
    %c0_59 = arith.constant 0 : index
    %170 = vector.load %arg4[%c5, %c0_59] : memref<9x256xbf16, #tpu.memory_space<vmem>>, vector<1x256xbf16>
    %171 = vector.broadcast %170 : vector<1x256xbf16> to vector<8x256xbf16>
    %172 = arith.mulf %169, %171 : vector<8x256xbf16>
    %c5_60 = arith.constant 5 : index
    %c0_61 = arith.constant 0 : index
    %c0_62 = arith.constant 0 : index
    %173 = vector.load %arg5[%c5_60, %c0_61, %c0_62] : memref<9x4x8xbf16, #tpu.memory_space<vmem>>, vector<1x4x8xbf16>
    %174 = vector.shape_cast %173 : vector<1x4x8xbf16> to vector<4x8xbf16>
    %cst_63 = arith.constant dense<0.000000e+00> : vector<4x256xf32>
    %175 = tpu.matmul %174, %172, %cst_63 {dimension_numbers = #tpu.dot_dimension_numbers<[1], [0], [0], [1], [0, 0, 1, 1], [], []>} : vector<4x8xbf16>, vector<8x256xbf16>, vector<4x256xf32> -> vector<4x256xf32>
    %176 = arith.addf %166, %175 : vector<4x256xf32>
    %177 = vector.extract_strided_slice %123 {offsets = [0, 15], sizes = [8, 241], strides = [1, 1]} : vector<8x256xbf16> to vector<8x241xbf16>
    %178 = vector.extract_strided_slice %123 {offsets = [0, 0], sizes = [8, 15], strides = [1, 1]} : vector<8x256xbf16> to vector<8x15xbf16>
    %179 = tpu.concatenate %177, %178 in 1 : vector<8x241xbf16>, vector<8x15xbf16> -> vector<8x256xbf16>
    %c6 = arith.constant 6 : index
    %c0_64 = arith.constant 0 : index
    %180 = vector.load %arg4[%c6, %c0_64] : memref<9x256xbf16, #tpu.memory_space<vmem>>, vector<1x256xbf16>
    %181 = vector.broadcast %180 : vector<1x256xbf16> to vector<8x256xbf16>
    %182 = arith.mulf %179, %181 : vector<8x256xbf16>
    %c6_65 = arith.constant 6 : index
    %c0_66 = arith.constant 0 : index
    %c0_67 = arith.constant 0 : index
    %183 = vector.load %arg5[%c6_65, %c0_66, %c0_67] : memref<9x4x8xbf16, #tpu.memory_space<vmem>>, vector<1x4x8xbf16>
    %184 = vector.shape_cast %183 : vector<1x4x8xbf16> to vector<4x8xbf16>
    %cst_68 = arith.constant dense<0.000000e+00> : vector<4x256xf32>
    %185 = tpu.matmul %184, %182, %cst_68 {dimension_numbers = #tpu.dot_dimension_numbers<[1], [0], [0], [1], [0, 0, 1, 1], [], []>} : vector<4x8xbf16>, vector<8x256xbf16>, vector<4x256xf32> -> vector<4x256xf32>
    %186 = arith.addf %176, %185 : vector<4x256xf32>
    %187 = vector.extract_strided_slice %123 {offsets = [0, 16], sizes = [8, 240], strides = [1, 1]} : vector<8x256xbf16> to vector<8x240xbf16>
    %188 = vector.extract_strided_slice %123 {offsets = [0, 0], sizes = [8, 16], strides = [1, 1]} : vector<8x256xbf16> to vector<8x16xbf16>
    %189 = tpu.concatenate %187, %188 in 1 : vector<8x240xbf16>, vector<8x16xbf16> -> vector<8x256xbf16>
    %c7 = arith.constant 7 : index
    %c0_69 = arith.constant 0 : index
    %190 = vector.load %arg4[%c7, %c0_69] : memref<9x256xbf16, #tpu.memory_space<vmem>>, vector<1x256xbf16>
    %191 = vector.broadcast %190 : vector<1x256xbf16> to vector<8x256xbf16>
    %192 = arith.mulf %189, %191 : vector<8x256xbf16>
    %c7_70 = arith.constant 7 : index
    %c0_71 = arith.constant 0 : index
    %c0_72 = arith.constant 0 : index
    %193 = vector.load %arg5[%c7_70, %c0_71, %c0_72] : memref<9x4x8xbf16, #tpu.memory_space<vmem>>, vector<1x4x8xbf16>
    %194 = vector.shape_cast %193 : vector<1x4x8xbf16> to vector<4x8xbf16>
    %cst_73 = arith.constant dense<0.000000e+00> : vector<4x256xf32>
    %195 = tpu.matmul %194, %192, %cst_73 {dimension_numbers = #tpu.dot_dimension_numbers<[1], [0], [0], [1], [0, 0, 1, 1], [], []>} : vector<4x8xbf16>, vector<8x256xbf16>, vector<4x256xf32> -> vector<4x256xf32>
    %196 = arith.addf %186, %195 : vector<4x256xf32>
    %197 = vector.extract_strided_slice %123 {offsets = [0, 17], sizes = [8, 239], strides = [1, 1]} : vector<8x256xbf16> to vector<8x239xbf16>
    %198 = vector.extract_strided_slice %123 {offsets = [0, 0], sizes = [8, 17], strides = [1, 1]} : vector<8x256xbf16> to vector<8x17xbf16>
    %199 = tpu.concatenate %197, %198 in 1 : vector<8x239xbf16>, vector<8x17xbf16> -> vector<8x256xbf16>
    %c8 = arith.constant 8 : index
    %c0_74 = arith.constant 0 : index
    %200 = vector.load %arg4[%c8, %c0_74] : memref<9x256xbf16, #tpu.memory_space<vmem>>, vector<1x256xbf16>
    %201 = vector.broadcast %200 : vector<1x256xbf16> to vector<8x256xbf16>
    %202 = arith.mulf %199, %201 : vector<8x256xbf16>
    %c8_75 = arith.constant 8 : index
    %c0_76 = arith.constant 0 : index
    %c0_77 = arith.constant 0 : index
    %203 = vector.load %arg5[%c8_75, %c0_76, %c0_77] : memref<9x4x8xbf16, #tpu.memory_space<vmem>>, vector<1x4x8xbf16>
    %204 = vector.shape_cast %203 : vector<1x4x8xbf16> to vector<4x8xbf16>
    %cst_78 = arith.constant dense<0.000000e+00> : vector<4x256xf32>
    %205 = tpu.matmul %204, %202, %cst_78 {dimension_numbers = #tpu.dot_dimension_numbers<[1], [0], [0], [1], [0, 0, 1, 1], [], []>} : vector<4x8xbf16>, vector<8x256xbf16>, vector<4x256xf32> -> vector<4x256xf32>
    %206 = arith.addf %196, %205 : vector<4x256xf32>
    %c0_79 = arith.constant 0 : index
    %c0_80 = arith.constant 0 : index
    %207 = vector.load %arg6[%c0_79, %c0_80] : memref<4x1xf32, #tpu.memory_space<vmem>>, vector<4x1xf32>
    %208 = vector.broadcast %207 : vector<4x1xf32> to vector<4x256xf32>
    %209 = arith.addf %206, %208 : vector<4x256xf32>
    %cst_81 = arith.constant 0.000000e+00 : f32
    %210 = vector.broadcast %cst_81 : f32 to vector<4x256xf32>
    %211 = arith.maximumf %209, %210 : vector<4x256xf32>
    %212 = arith.truncf %211 : vector<4x256xf32> to vector<4x256xbf16>
    %213 = vector.extract_strided_slice %212 {offsets = [0, 239], sizes = [4, 17], strides = [1, 1]} : vector<4x256xbf16> to vector<4x17xbf16>
    %214 = vector.extract_strided_slice %212 {offsets = [0, 0], sizes = [4, 239], strides = [1, 1]} : vector<4x256xbf16> to vector<4x239xbf16>
    %215 = tpu.concatenate %213, %214 in 1 : vector<4x17xbf16>, vector<4x239xbf16> -> vector<4x256xbf16>
    %c0_82 = arith.constant 0 : index
    %c0_83 = arith.constant 0 : index
    %216 = vector.load %arg4[%c0_82, %c0_83] : memref<9x256xbf16, #tpu.memory_space<vmem>>, vector<1x256xbf16>
    %217 = vector.broadcast %216 : vector<1x256xbf16> to vector<4x256xbf16>
    %218 = arith.mulf %215, %217 : vector<4x256xbf16>
    %c0_84 = arith.constant 0 : index
    %c0_85 = arith.constant 0 : index
    %c0_86 = arith.constant 0 : index
    %219 = vector.load %arg7[%c0_84, %c0_85, %c0_86] : memref<9x4x4xbf16, #tpu.memory_space<vmem>>, vector<1x4x4xbf16>
    %220 = vector.shape_cast %219 : vector<1x4x4xbf16> to vector<4x4xbf16>
    %cst_87 = arith.constant dense<0.000000e+00> : vector<4x256xf32>
    %221 = tpu.matmul %220, %218, %cst_87 {dimension_numbers = #tpu.dot_dimension_numbers<[1], [0], [0], [1], [0, 0, 1, 1], [], []>} : vector<4x4xbf16>, vector<4x256xbf16>, vector<4x256xf32> -> vector<4x256xf32>
    %222 = vector.extract_strided_slice %212 {offsets = [0, 240], sizes = [4, 16], strides = [1, 1]} : vector<4x256xbf16> to vector<4x16xbf16>
    %223 = vector.extract_strided_slice %212 {offsets = [0, 0], sizes = [4, 240], strides = [1, 1]} : vector<4x256xbf16> to vector<4x240xbf16>
    %224 = tpu.concatenate %222, %223 in 1 : vector<4x16xbf16>, vector<4x240xbf16> -> vector<4x256xbf16>
    %c1_88 = arith.constant 1 : index
    %c0_89 = arith.constant 0 : index
    %225 = vector.load %arg4[%c1_88, %c0_89] : memref<9x256xbf16, #tpu.memory_space<vmem>>, vector<1x256xbf16>
    %226 = vector.broadcast %225 : vector<1x256xbf16> to vector<4x256xbf16>
    %227 = arith.mulf %224, %226 : vector<4x256xbf16>
    %c1_90 = arith.constant 1 : index
    %c0_91 = arith.constant 0 : index
    %c0_92 = arith.constant 0 : index
    %228 = vector.load %arg7[%c1_90, %c0_91, %c0_92] : memref<9x4x4xbf16, #tpu.memory_space<vmem>>, vector<1x4x4xbf16>
    %229 = vector.shape_cast %228 : vector<1x4x4xbf16> to vector<4x4xbf16>
    %cst_93 = arith.constant dense<0.000000e+00> : vector<4x256xf32>
    %230 = tpu.matmul %229, %227, %cst_93 {dimension_numbers = #tpu.dot_dimension_numbers<[1], [0], [0], [1], [0, 0, 1, 1], [], []>} : vector<4x4xbf16>, vector<4x256xbf16>, vector<4x256xf32> -> vector<4x256xf32>
    %231 = arith.addf %221, %230 : vector<4x256xf32>
    %232 = vector.extract_strided_slice %212 {offsets = [0, 241], sizes = [4, 15], strides = [1, 1]} : vector<4x256xbf16> to vector<4x15xbf16>
    %233 = vector.extract_strided_slice %212 {offsets = [0, 0], sizes = [4, 241], strides = [1, 1]} : vector<4x256xbf16> to vector<4x241xbf16>
    %234 = tpu.concatenate %232, %233 in 1 : vector<4x15xbf16>, vector<4x241xbf16> -> vector<4x256xbf16>
    %c2_94 = arith.constant 2 : index
    %c0_95 = arith.constant 0 : index
    %235 = vector.load %arg4[%c2_94, %c0_95] : memref<9x256xbf16, #tpu.memory_space<vmem>>, vector<1x256xbf16>
    %236 = vector.broadcast %235 : vector<1x256xbf16> to vector<4x256xbf16>
    %237 = arith.mulf %234, %236 : vector<4x256xbf16>
    %c2_96 = arith.constant 2 : index
    %c0_97 = arith.constant 0 : index
    %c0_98 = arith.constant 0 : index
    %238 = vector.load %arg7[%c2_96, %c0_97, %c0_98] : memref<9x4x4xbf16, #tpu.memory_space<vmem>>, vector<1x4x4xbf16>
    %239 = vector.shape_cast %238 : vector<1x4x4xbf16> to vector<4x4xbf16>
    %cst_99 = arith.constant dense<0.000000e+00> : vector<4x256xf32>
    %240 = tpu.matmul %239, %237, %cst_99 {dimension_numbers = #tpu.dot_dimension_numbers<[1], [0], [0], [1], [0, 0, 1, 1], [], []>} : vector<4x4xbf16>, vector<4x256xbf16>, vector<4x256xf32> -> vector<4x256xf32>
    %241 = arith.addf %231, %240 : vector<4x256xf32>
    %242 = vector.extract_strided_slice %212 {offsets = [0, 255], sizes = [4, 1], strides = [1, 1]} : vector<4x256xbf16> to vector<4x1xbf16>
    %243 = vector.extract_strided_slice %212 {offsets = [0, 0], sizes = [4, 255], strides = [1, 1]} : vector<4x256xbf16> to vector<4x255xbf16>
    %244 = tpu.concatenate %242, %243 in 1 : vector<4x1xbf16>, vector<4x255xbf16> -> vector<4x256xbf16>
    %c3_100 = arith.constant 3 : index
    %c0_101 = arith.constant 0 : index
    %245 = vector.load %arg4[%c3_100, %c0_101] : memref<9x256xbf16, #tpu.memory_space<vmem>>, vector<1x256xbf16>
    %246 = vector.broadcast %245 : vector<1x256xbf16> to vector<4x256xbf16>
    %247 = arith.mulf %244, %246 : vector<4x256xbf16>
    %c3_102 = arith.constant 3 : index
    %c0_103 = arith.constant 0 : index
    %c0_104 = arith.constant 0 : index
    %248 = vector.load %arg7[%c3_102, %c0_103, %c0_104] : memref<9x4x4xbf16, #tpu.memory_space<vmem>>, vector<1x4x4xbf16>
    %249 = vector.shape_cast %248 : vector<1x4x4xbf16> to vector<4x4xbf16>
    %cst_105 = arith.constant dense<0.000000e+00> : vector<4x256xf32>
    %250 = tpu.matmul %249, %247, %cst_105 {dimension_numbers = #tpu.dot_dimension_numbers<[1], [0], [0], [1], [0, 0, 1, 1], [], []>} : vector<4x4xbf16>, vector<4x256xbf16>, vector<4x256xf32> -> vector<4x256xf32>
    %251 = arith.addf %241, %250 : vector<4x256xf32>
    %c4_106 = arith.constant 4 : index
    %c0_107 = arith.constant 0 : index
    %c0_108 = arith.constant 0 : index
    %252 = vector.load %arg7[%c4_106, %c0_107, %c0_108] : memref<9x4x4xbf16, #tpu.memory_space<vmem>>, vector<1x4x4xbf16>
    %253 = vector.shape_cast %252 : vector<1x4x4xbf16> to vector<4x4xbf16>
    %cst_109 = arith.constant dense<0.000000e+00> : vector<4x256xf32>
    %254 = tpu.matmul %253, %212, %cst_109 {dimension_numbers = #tpu.dot_dimension_numbers<[1], [0], [0], [1], [0, 0, 1, 1], [], []>} : vector<4x4xbf16>, vector<4x256xbf16>, vector<4x256xf32> -> vector<4x256xf32>
    %255 = arith.addf %251, %254 : vector<4x256xf32>
    %256 = vector.extract_strided_slice %212 {offsets = [0, 1], sizes = [4, 255], strides = [1, 1]} : vector<4x256xbf16> to vector<4x255xbf16>
    %257 = vector.extract_strided_slice %212 {offsets = [0, 0], sizes = [4, 1], strides = [1, 1]} : vector<4x256xbf16> to vector<4x1xbf16>
    %258 = tpu.concatenate %256, %257 in 1 : vector<4x255xbf16>, vector<4x1xbf16> -> vector<4x256xbf16>
    %c5_110 = arith.constant 5 : index
    %c0_111 = arith.constant 0 : index
    %259 = vector.load %arg4[%c5_110, %c0_111] : memref<9x256xbf16, #tpu.memory_space<vmem>>, vector<1x256xbf16>
    %260 = vector.broadcast %259 : vector<1x256xbf16> to vector<4x256xbf16>
    %261 = arith.mulf %258, %260 : vector<4x256xbf16>
    %c5_112 = arith.constant 5 : index
    %c0_113 = arith.constant 0 : index
    %c0_114 = arith.constant 0 : index
    %262 = vector.load %arg7[%c5_112, %c0_113, %c0_114] : memref<9x4x4xbf16, #tpu.memory_space<vmem>>, vector<1x4x4xbf16>
    %263 = vector.shape_cast %262 : vector<1x4x4xbf16> to vector<4x4xbf16>
    %cst_115 = arith.constant dense<0.000000e+00> : vector<4x256xf32>
    %264 = tpu.matmul %263, %261, %cst_115 {dimension_numbers = #tpu.dot_dimension_numbers<[1], [0], [0], [1], [0, 0, 1, 1], [], []>} : vector<4x4xbf16>, vector<4x256xbf16>, vector<4x256xf32> -> vector<4x256xf32>
    %265 = arith.addf %255, %264 : vector<4x256xf32>
    %266 = vector.extract_strided_slice %212 {offsets = [0, 15], sizes = [4, 241], strides = [1, 1]} : vector<4x256xbf16> to vector<4x241xbf16>
    %267 = vector.extract_strided_slice %212 {offsets = [0, 0], sizes = [4, 15], strides = [1, 1]} : vector<4x256xbf16> to vector<4x15xbf16>
    %268 = tpu.concatenate %266, %267 in 1 : vector<4x241xbf16>, vector<4x15xbf16> -> vector<4x256xbf16>
    %c6_116 = arith.constant 6 : index
    %c0_117 = arith.constant 0 : index
    %269 = vector.load %arg4[%c6_116, %c0_117] : memref<9x256xbf16, #tpu.memory_space<vmem>>, vector<1x256xbf16>
    %270 = vector.broadcast %269 : vector<1x256xbf16> to vector<4x256xbf16>
    %271 = arith.mulf %268, %270 : vector<4x256xbf16>
    %c6_118 = arith.constant 6 : index
    %c0_119 = arith.constant 0 : index
    %c0_120 = arith.constant 0 : index
    %272 = vector.load %arg7[%c6_118, %c0_119, %c0_120] : memref<9x4x4xbf16, #tpu.memory_space<vmem>>, vector<1x4x4xbf16>
    %273 = vector.shape_cast %272 : vector<1x4x4xbf16> to vector<4x4xbf16>
    %cst_121 = arith.constant dense<0.000000e+00> : vector<4x256xf32>
    %274 = tpu.matmul %273, %271, %cst_121 {dimension_numbers = #tpu.dot_dimension_numbers<[1], [0], [0], [1], [0, 0, 1, 1], [], []>} : vector<4x4xbf16>, vector<4x256xbf16>, vector<4x256xf32> -> vector<4x256xf32>
    %275 = arith.addf %265, %274 : vector<4x256xf32>
    %276 = vector.extract_strided_slice %212 {offsets = [0, 16], sizes = [4, 240], strides = [1, 1]} : vector<4x256xbf16> to vector<4x240xbf16>
    %277 = vector.extract_strided_slice %212 {offsets = [0, 0], sizes = [4, 16], strides = [1, 1]} : vector<4x256xbf16> to vector<4x16xbf16>
    %278 = tpu.concatenate %276, %277 in 1 : vector<4x240xbf16>, vector<4x16xbf16> -> vector<4x256xbf16>
    %c7_122 = arith.constant 7 : index
    %c0_123 = arith.constant 0 : index
    %279 = vector.load %arg4[%c7_122, %c0_123] : memref<9x256xbf16, #tpu.memory_space<vmem>>, vector<1x256xbf16>
    %280 = vector.broadcast %279 : vector<1x256xbf16> to vector<4x256xbf16>
    %281 = arith.mulf %278, %280 : vector<4x256xbf16>
    %c7_124 = arith.constant 7 : index
    %c0_125 = arith.constant 0 : index
    %c0_126 = arith.constant 0 : index
    %282 = vector.load %arg7[%c7_124, %c0_125, %c0_126] : memref<9x4x4xbf16, #tpu.memory_space<vmem>>, vector<1x4x4xbf16>
    %283 = vector.shape_cast %282 : vector<1x4x4xbf16> to vector<4x4xbf16>
    %cst_127 = arith.constant dense<0.000000e+00> : vector<4x256xf32>
    %284 = tpu.matmul %283, %281, %cst_127 {dimension_numbers = #tpu.dot_dimension_numbers<[1], [0], [0], [1], [0, 0, 1, 1], [], []>} : vector<4x4xbf16>, vector<4x256xbf16>, vector<4x256xf32> -> vector<4x256xf32>
    %285 = arith.addf %275, %284 : vector<4x256xf32>
    %286 = vector.extract_strided_slice %212 {offsets = [0, 17], sizes = [4, 239], strides = [1, 1]} : vector<4x256xbf16> to vector<4x239xbf16>
    %287 = vector.extract_strided_slice %212 {offsets = [0, 0], sizes = [4, 17], strides = [1, 1]} : vector<4x256xbf16> to vector<4x17xbf16>
    %288 = tpu.concatenate %286, %287 in 1 : vector<4x239xbf16>, vector<4x17xbf16> -> vector<4x256xbf16>
    %c8_128 = arith.constant 8 : index
    %c0_129 = arith.constant 0 : index
    %289 = vector.load %arg4[%c8_128, %c0_129] : memref<9x256xbf16, #tpu.memory_space<vmem>>, vector<1x256xbf16>
    %290 = vector.broadcast %289 : vector<1x256xbf16> to vector<4x256xbf16>
    %291 = arith.mulf %288, %290 : vector<4x256xbf16>
    %c8_130 = arith.constant 8 : index
    %c0_131 = arith.constant 0 : index
    %c0_132 = arith.constant 0 : index
    %292 = vector.load %arg7[%c8_130, %c0_131, %c0_132] : memref<9x4x4xbf16, #tpu.memory_space<vmem>>, vector<1x4x4xbf16>
    %293 = vector.shape_cast %292 : vector<1x4x4xbf16> to vector<4x4xbf16>
    %cst_133 = arith.constant dense<0.000000e+00> : vector<4x256xf32>
    %294 = tpu.matmul %293, %291, %cst_133 {dimension_numbers = #tpu.dot_dimension_numbers<[1], [0], [0], [1], [0, 0, 1, 1], [], []>} : vector<4x4xbf16>, vector<4x256xbf16>, vector<4x256xf32> -> vector<4x256xf32>
    %295 = arith.addf %285, %294 : vector<4x256xf32>
    %c0_134 = arith.constant 0 : index
    %c0_135 = arith.constant 0 : index
    %296 = vector.load %arg8[%c0_134, %c0_135] : memref<4x1xf32, #tpu.memory_space<vmem>>, vector<4x1xf32>
    %297 = vector.broadcast %296 : vector<4x1xf32> to vector<4x256xf32>
    %298 = arith.addf %295, %297 : vector<4x256xf32>
    %cst_136 = arith.constant 0.000000e+00 : f32
    %299 = vector.broadcast %cst_136 : f32 to vector<4x256xf32>
    %300 = arith.maximumf %298, %299 : vector<4x256xf32>
    %c0_137 = arith.constant 0 : index
    %c0_138 = arith.constant 0 : index
    %c0_139 = arith.constant 0 : index
    %301 = vector.load %arg9[%c0_137, %c0_138, %c0_139] : memref<1x4x256xf32, #tpu.memory_space<vmem>>, vector<1x4x256xf32>
    %302 = vector.shape_cast %301 : vector<1x4x256xf32> to vector<4x256xf32>
    %303 = vector.shape_cast %300 : vector<4x256xf32> to vector<1x4x256xf32>
    tpu.vector_store %arg9[%c0_137, %c0_138, %c0_139], %303 {strides = array<i32>} : memref<1x4x256xf32, #tpu.memory_space<vmem>>, vector<1x4x256xf32>,
    return
  }
  func.func @transform_0(%arg0: i32) -> (i32, i32, i32) {
    %c0_i32 = arith.constant 0 : i32
    %c0_i32_0 = arith.constant 0 : i32
    %c0_i32_1 = arith.constant 0 : i32
    return %arg0, %c0_i32, %c0_i32_0 : i32, i32, i32
  }
  func.func @transform_1(%arg0: i32) -> (i32, i32, i32) {
    %c0_i32 = arith.constant 0 : i32
    %c0_i32_0 = arith.constant 0 : i32
    %c0_i32_1 = arith.constant 0 : i32
    return %arg0, %c0_i32, %c0_i32_0 : i32, i32, i32
  }
  func.func @transform_2(%arg0: i32) -> (i32, i32) {
    %c0_i32 = arith.constant 0 : i32
    %c0_i32_0 = arith.constant 0 : i32
    %c0_i32_1 = arith.constant 0 : i32
    return %c0_i32, %c0_i32_0 : i32, i32
  }
  func.func @transform_3(%arg0: i32) -> (i32, i32) {
    %c0_i32 = arith.constant 0 : i32
    %c0_i32_0 = arith.constant 0 : i32
    %c0_i32_1 = arith.constant 0 : i32
    return %c0_i32, %c0_i32_0 : i32, i32
  }
  func.func @transform_4(%arg0: i32) -> (i32, i32, i32) {
    %c0_i32 = arith.constant 0 : i32
    %c0_i32_0 = arith.constant 0 : i32
    %c0_i32_1 = arith.constant 0 : i32
    %c0_i32_2 = arith.constant 0 : i32
    return %c0_i32, %c0_i32_0, %c0_i32_1 : i32, i32, i32
  }
  func.func @transform_5(%arg0: i32) -> (i32, i32) {
    %c0_i32 = arith.constant 0 : i32
    %c0_i32_0 = arith.constant 0 : i32
    %c0_i32_1 = arith.constant 0 : i32
    return %c0_i32, %c0_i32_0 : i32, i32
  }
  func.func @transform_6(%arg0: i32) -> (i32, i32, i32) {
    %c0_i32 = arith.constant 0 : i32
    %c0_i32_0 = arith.constant 0 : i32
    %c0_i32_1 = arith.constant 0 : i32
    %c0_i32_2 = arith.constant 0 : i32
    return %c0_i32, %c0_i32_0, %c0_i32_1 : i32, i32, i32
  }
  func.func @transform_7(%arg0: i32) -> (i32, i32) {
    %c0_i32 = arith.constant 0 : i32
    %c0_i32_0 = arith.constant 0 : i32
    %c0_i32_1 = arith.constant 0 : i32
    return %c0_i32, %c0_i32_0 : i32, i32
  }
  func.func @transform_8(%arg0: i32) -> (i32, i32, i32) {
    %c0_i32 = arith.constant 0 : i32
    %c0_i32_0 = arith.constant 0 : i32
    %c0_i32_1 = arith.constant 0 : i32
    return %arg0, %c0_i32, %c0_i32_0 : i32, i32, i32
  }
}

</mosaic_0001>

<llo_original>
// kernel: tpu_custom_call.1
$region0: #{tpu_custom_call.1}
  #allocation0 [shape = 'u32[]', space=smem, size = 0x4, offset = 0x4, fixed_abs, tag = 'smem constant byte address 0x4 - core index']
  #allocation1 [shape = 'u32[144,128]{1,0:T(1,128)}', space=vmem, size = 0x12000, scoped, tag = 'internal scratch']
  %s0 = inlined_call_operand.hbm [shape: f32[8,128], index: 0, kind: input, shape index: {}]
  %s1 = inlined_call_operand.hbm [shape: f32[8,128], index: 1, kind: output, shape index: {}]
  %s2 = sld [smem:[#allocation0]]
  $region18: #{tpu_custom_call.1} parent=0
    _
  %s4 = ssub.s32 1, %s2
  %s5 = scalar_select 0, %s4, %s2
  $region1: #{tpu_custom_call.1} parent=0
    #allocation2 [shape = 'u8[4096]{0}', space=vmem, size = 0x1000, scoped, tag = 'input window, operand 0, single buffered']
    #allocation3 [shape = 's32[1]{0}', space=sflag, size = 0x4, scoped, tag = 'scoped memory for tpu_custom_call.1']
    #allocation4 [shape = 's32[1]{0}', space=sflag, size = 0x4, scoped, tag = 'scoped memory for tpu_custom_call.1']
    #allocation5 [shape = 'u8[4096]{0}', space=vmem, size = 0x1000, scoped, tag = 'output window, operand 0, single buffered']
    %6 = vsyncpa [#allocation3], 0
    %7 = vsyncpa [#allocation4], 0
    // Predicated region
    $region2: #{tpu_custom_call.1} parent=1 // pred_check
      _
    $region3: #{tpu_custom_call.1} parent=1 // pred_check_branch
      %9 = sbr.rel (0) target = $region5
    $region4: #{tpu_custom_call.1} parent=1 // pred_region
      %s11 = ssub.s32 128, 128
      %12 = vsyncadd [#allocation3], %s11
      %s14 = sshll.u32 [#allocation2], 4
      %s15 = int_to_ptr.vmem [resolvable:$true] %s14
      %17 = dma.hbm_to_vmem [thread:$0]  %s0, 128, %s15, [#allocation3]
    $region5: #{tpu_custom_call.1} parent=1 // pred_fallthru
      _
    // Predicated region
    $region6: #{tpu_custom_call.1} parent=1 // pred_check
      _
    $region7: #{tpu_custom_call.1} parent=1 // pred_check_branch
      %19 = sbr.rel (0) target = $region9
    $region8: #{tpu_custom_call.1} parent=1 // pred_region
      %20 = dma.done [#allocation3], 128
    $region9: #{tpu_custom_call.1} parent=1 // pred_fallthru
      _
    %v21 = vld [vmem:[#allocation2] sm:$0xff]
    %22 = vrot.lane.b32.xlu0 %v21, 1
    %v23 = vpop.permute.xlu0 %22
    %24 = vst [vmem:[#allocation5] sm:$0xff] %v23
    // Predicated region
    $region10: #{tpu_custom_call.1} parent=1 // pred_check
      _
    $region11: #{tpu_custom_call.1} parent=1 // pred_check_branch
      %26 = sbr.rel (0) target = $region13
    $region12: #{tpu_custom_call.1} parent=1 // pred_region
      %s28 = ssub.s32 128, 128
      %29 = vsyncadd [#allocation4], %s28
      %s31 = sshll.u32 [#allocation5], 4
      %s32 = int_to_ptr.vmem [resolvable:$true] %s31
      %34 = dma.vmem_to_hbm [thread:$0]  %s32, 128, %s1, [#allocation4]
    $region13: #{tpu_custom_call.1} parent=1 // pred_fallthru
      _
    // Predicated region
    $region14: #{tpu_custom_call.1} parent=1 // pred_check
      _
    $region15: #{tpu_custom_call.1} parent=1 // pred_check_branch
      %36 = sbr.rel (0) target = $region17
    $region16: #{tpu_custom_call.1} parent=1 // pred_region
      %37 = dma.done [#allocation4], 128
    $region17: #{tpu_custom_call.1} parent=1 // pred_fallthru
      _
    %38 = vsyncpa [#allocation3], 1
    %39 = vsyncpa [#allocation4], 1

// kernel: tpu_custom_call.1
$region0: #{tpu_custom_call.1}
  #allocation0 [shape = 'u32[]', space=smem, size = 0x4, offset = 0x4, fixed_abs, tag = 'smem constant byte address 0x4 - core index']
  #allocation1 [shape = 'u32[144,128]{1,0:T(1,128)}', space=vmem, size = 0x12000, scoped, tag = 'internal scratch']
  %s0 = inlined_call_operand.vmem [shape: bf16[2,32,8], index: 0, kind: input, shape index: {}]
  %s1 = inlined_call_operand.vmem [shape: bf16[2,4,256], index: 1, kind: input, shape index: {}]
  %s2 = inlined_call_operand.vmem [shape: bf16[8,16], index: 2, kind: input, shape index: {}]
  %s3 = inlined_call_operand.vmem [shape: bf16[9,256], index: 3, kind: input, shape index: {}]
  %s4 = inlined_call_operand.vmem [shape: bf16[9,4,8], index: 4, kind: input, shape index: {}]
  %s5 = inlined_call_operand.vmem [shape: f32[4,1], index: 5, kind: input, shape index: {}]
  %s6 = inlined_call_operand.vmem [shape: bf16[9,4,4], index: 6, kind: input, shape index: {}]
  %s7 = inlined_call_operand.vmem [shape: f32[4,1], index: 7, kind: input, shape index: {}]
  %s8 = inlined_call_operand.hbm [shape: f32[2,4,256], index: 8, kind: output, shape index: {}]
  %s9 = sld [smem:[#allocation0]]
  $region65: #{tpu_custom_call.1} parent=0
    _
  %s11 = ssub.s32 1, %s9
  %s12 = scalar_select 0, %s11, %s9
  $region1: #{tpu_custom_call.1} parent=0
    #allocation2 [shape = 'u8[8192]{0}', space=vmem, size = 0x2000, scoped, tag = 'output window, operand 0']
    #allocation3 [shape = 's32[2]{0}', space=sflag, size = 0x8, scoped, tag = 'scoped memory for tpu_custom_call.1']
    %13 = vsyncpa [#allocation3], 0
    %s14 = scalar_lea.sflag [#allocation3], 1
    %15 = vsyncpa %s14, 0
    loop: start=0, step=1, limit=4
    $region2: #{tpu_custom_call.1} parent=1 // loop_pre_header
      _
    $region3: #{tpu_custom_call.1} parent=1 // loop_header
      %s17 = sphi 0, %s21
      %p18 = scmp.ge.s32.totalorder %s17, 4
      %s27 = sphi 0, %s29
      %s30 = sphi 0, %s27
      %s31 = sphi 0, %s30
      %s47 = sphi 0, %s31
      %s53 = sphi 0, %s55
      %s56 = sphi 0, %s53
      %s57 = sphi 0, %s56
      %s73 = sphi 0, %s57
      %s77 = sphi 0, %s77
      %s79 = sphi 0, %s77
      %s80 = sphi 0, %s79
      %s94 = sphi 0, %s80
      %s98 = sphi 0, %s98
      %s100 = sphi 0, %s98
      %s101 = sphi 0, %s100
      %s115 = sphi 0, %s101
      %s119 = sphi 0, %s119
      %s121 = sphi 0, %s119
      %s122 = sphi 0, %s121
      %s136 = sphi 0, %s122
      %s140 = sphi 0, %s140
      %s142 = sphi 0, %s140
      %s143 = sphi 0, %s142
      %s157 = sphi 0, %s143
      %s161 = sphi 0, %s161
      %s163 = sphi 0, %s161
      %s164 = sphi 0, %s163
      %s178 = sphi 0, %s164
      %s182 = sphi 0, %s182
      %s184 = sphi 0, %s182
      %s185 = sphi 0, %s184
      %s199 = sphi 0, %s185
      %s205 = sphi 0, %s207
      %s208 = sphi 0, %s205
      %s209 = sphi 0, %s208
      %s225 = sphi 0, %s209
    $region4: #{tpu_custom_call.1} parent=1 // loop_header_branch
      %20 = sbr.rel (%p18) target = $region8
    $region5: #{tpu_custom_call.1} parent=1 // loop_body
      %s22 = ssub.s32 %s17, 1
      %s23 = ssub.s32 %s17, 2
      %s24 = sadd.s32 %s17, 1
      %s25 = ssub.s32 %s17, %s24
      %p26 = scmp.eq.s32.totalorder %s25, 0
      %s28 = sadd.s32 %s27, 1
      %s29 = scalar_select %p26, %s27, %s28
      %p32 = pneg %p26
      %p33 = scmp.eq.s32.totalorder %s17, 1
      %p34 = por %p32, %p33
      %p35 = scmp.ne.s32.totalorder %s27, %s30
      %p36 = scmp.eq.s32.totalorder %s17, 0
      %p37 = por %p35, %p36
      %p38 = scmp.ne.s32.totalorder %s27, %s30
      %p39 = scmp.eq.s32.totalorder %s22, 1
      %p40 = por %p38, %p39
      %p41 = scmp.ne.s32.totalorder %s30, %s31
      %p42 = scmp.eq.s32.totalorder %s22, 0
      %p43 = por %p41, %p42
      %p44 = scmp.ne.s32.totalorder %s30, %s31
      %p45 = scmp.eq.s32.totalorder %s23, 1
      %p46 = por %p44, %p45
      %p48 = scmp.ne.s32.totalorder %s31, %s47
      %p49 = scmp.eq.s32.totalorder %s23, 0
      %p50 = por %p48, %p49
      %s51 = ssub.s32 %s17, %s24
      %p52 = scmp.eq.s32.totalorder %s51, 0
      %s54 = sadd.s32 %s53, 1
      %s55 = scalar_select %p52, %s53, %s54
      %p58 = pneg %p52
      %p59 = scmp.eq.s32.totalorder %s17, 1
      %p60 = por %p58, %p59
      %p61 = scmp.ne.s32.totalorder %s53, %s56
      %p62 = scmp.eq.s32.totalorder %s17, 0
      %p63 = por %p61, %p62
      %p64 = scmp.ne.s32.totalorder %s53, %s56
      %p65 = scmp.eq.s32.totalorder %s22, 1
      %p66 = por %p64, %p65
      %p67 = scmp.ne.s32.totalorder %s56, %s57
      %p68 = scmp.eq.s32.totalorder %s22, 0
      %p69 = por %p67, %p68
      %p70 = scmp.ne.s32.totalorder %s56, %s57
      %p71 = scmp.eq.s32.totalorder %s23, 1
      %p72 = por %p70, %p71
      %p74 = scmp.ne.s32.totalorder %s57, %s73
      %p75 = scmp.eq.s32.totalorder %s23, 0
      %p76 = por %p74, %p75
      %s78 = sadd.s32 %s77, 1
      %p81 = scmp.eq.s32.totalorder %s17, 1
      %p82 = scmp.ne.s32.totalorder %s77, %s79
      %p83 = scmp.eq.s32.totalorder %s17, 0
      %p84 = por %p82, %p83
      %p85 = scmp.ne.s32.totalorder %s77, %s79
      %p86 = scmp.eq.s32.totalorder %s22, 1
      %p87 = por %p85, %p86
      %p88 = scmp.ne.s32.totalorder %s79, %s80
      %p89 = scmp.eq.s32.totalorder %s22, 0
      %p90 = por %p88, %p89
      %p91 = scmp.ne.s32.totalorder %s79, %s80
      %p92 = scmp.eq.s32.totalorder %s23, 1
      %p93 = por %p91, %p92
      %p95 = scmp.ne.s32.totalorder %s80, %s94
      %p96 = scmp.eq.s32.totalorder %s23, 0
      %p97 = por %p95, %p96
      %s99 = sadd.s32 %s98, 1
      %p102 = scmp.eq.s32.totalorder %s17, 1
      %p103 = scmp.ne.s32.totalorder %s98, %s100
      %p104 = scmp.eq.s32.totalorder %s17, 0
      %p105 = por %p103, %p104
      %p106 = scmp.ne.s32.totalorder %s98, %s100
      %p107 = scmp.eq.s32.totalorder %s22, 1
      %p108 = por %p106, %p107
      %p109 = scmp.ne.s32.totalorder %s100, %s101
      %p110 = scmp.eq.s32.totalorder %s22, 0
      %p111 = por %p109, %p110
      %p112 = scmp.ne.s32.totalorder %s100, %s101
      %p113 = scmp.eq.s32.totalorder %s23, 1
      %p114 = por %p112, %p113
      %p116 = scmp.ne.s32.totalorder %s101, %s115
      %p117 = scmp.eq.s32.totalorder %s23, 0
      %p118 = por %p116, %p117
      %s120 = sadd.s32 %s119, 1
      %p123 = scmp.eq.s32.totalorder %s17, 1
      %p124 = scmp.ne.s32.totalorder %s119, %s121
      %p125 = scmp.eq.s32.totalorder %s17, 0
      %p126 = por %p124, %p125
      %p127 = scmp.ne.s32.totalorder %s119, %s121
      %p128 = scmp.eq.s32.totalorder %s22, 1
      %p129 = por %p127, %p128
      %p130 = scmp.ne.s32.totalorder %s121, %s122
      %p131 = scmp.eq.s32.totalorder %s22, 0
      %p132 = por %p130, %p131
      %p133 = scmp.ne.s32.totalorder %s121, %s122
      %p134 = scmp.eq.s32.totalorder %s23, 1
      %p135 = por %p133, %p134
      %p137 = scmp.ne.s32.totalorder %s122, %s136
      %p138 = scmp.eq.s32.totalorder %s23, 0
      %p139 = por %p137, %p138
      %s141 = sadd.s32 %s140, 1
      %p144 = scmp.eq.s32.totalorder %s17, 1
      %p145 = scmp.ne.s32.totalorder %s140, %s142
      %p146 = scmp.eq.s32.totalorder %s17, 0
      %p147 = por %p145, %p146
      %p148 = scmp.ne.s32.totalorder %s140, %s142
      %p149 = scmp.eq.s32.totalorder %s22, 1
      %p150 = por %p148, %p149
      %p151 = scmp.ne.s32.totalorder %s142, %s143
      %p152 = scmp.eq.s32.totalorder %s22, 0
      %p153 = por %p151, %p152
      %p154 = scmp.ne.s32.totalorder %s142, %s143
      %p155 = scmp.eq.s32.totalorder %s23, 1
      %p156 = por %p154, %p155
      %p158 = scmp.ne.s32.totalorder %s143, %s157
      %p159 = scmp.eq.s32.totalorder %s23, 0
      %p160 = por %p158, %p159
      %s162 = sadd.s32 %s161, 1
      %p165 = scmp.eq.s32.totalorder %s17, 1
      %p166 = scmp.ne.s32.totalorder %s161, %s163
      %p167 = scmp.eq.s32.totalorder %s17, 0
      %p168 = por %p166, %p167
      %p169 = scmp.ne.s32.totalorder %s161, %s163
      %p170 = scmp.eq.s32.totalorder %s22, 1
      %p171 = por %p169, %p170
      %p172 = scmp.ne.s32.totalorder %s163, %s164
      %p173 = scmp.eq.s32.totalorder %s22, 0
      %p174 = por %p172, %p173
      %p175 = scmp.ne.s32.totalorder %s163, %s164
      %p176 = scmp.eq.s32.totalorder %s23, 1
      %p177 = por %p175, %p176
      %p179 = scmp.ne.s32.totalorder %s164, %s178
      %p180 = scmp.eq.s32.totalorder %s23, 0
      %p181 = por %p179, %p180
      %s183 = sadd.s32 %s182, 1
      %p186 = scmp.eq.s32.totalorder %s17, 1
      %p187 = scmp.ne.s32.totalorder %s182, %s184
      %p188 = scmp.eq.s32.totalorder %s17, 0
      %p189 = por %p187, %p188
      %p190 = scmp.ne.s32.totalorder %s182, %s184
      %p191 = scmp.eq.s32.totalorder %s22, 1
      %p192 = por %p190, %p191
      %p193 = scmp.ne.s32.totalorder %s184, %s185
      %p194 = scmp.eq.s32.totalorder %s22, 0
      %p195 = por %p193, %p194
      %p196 = scmp.ne.s32.totalorder %s184, %s185
      %p197 = scmp.eq.s32.totalorder %s23, 1
      %p198 = por %p196, %p197
      %p200 = scmp.ne.s32.totalorder %s185, %s199
      %p201 = scmp.eq.s32.totalorder %s23, 0
      %p202 = por %p200, %p201
      %s203 = ssub.s32 %s17, %s24
      %p204 = scmp.eq.s32.totalorder %s203, 0
      %s206 = sadd.s32 %s205, 1
      %s207 = scalar_select %p204, %s205, %s206
      %p210 = pneg %p204
      %p211 = scmp.eq.s32.totalorder %s17, 1
      %p212 = por %p210, %p211
      %p213 = scmp.ne.s32.totalorder %s205, %s208
      %p214 = scmp.eq.s32.totalorder %s17, 0
      %p215 = por %p213, %p214
      %p216 = scmp.ne.s32.totalorder %s205, %s208
      %p217 = scmp.eq.s32.totalorder %s22, 1
      %p218 = por %p216, %p217
      %p219 = scmp.ne.s32.totalorder %s208, %s209
      %p220 = scmp.eq.s32.totalorder %s22, 0
      %p221 = por %p219, %p220
      %p222 = scmp.ne.s32.totalorder %s208, %s209
      %p223 = scmp.eq.s32.totalorder %s23, 1
      %p224 = por %p222, %p223
      %p226 = scmp.ne.s32.totalorder %s209, %s225
      %p227 = scmp.eq.s32.totalorder %s23, 0
      %p228 = por %p226, %p227
      %p229 = scmp.le.s32.totalorder 1, %s17
      %p230 = scmp.lt.s32.totalorder %s17, 3
      %p231 = pnand %p229, %p230
      %p232 = pneg %p231
      // Predicated region
      $region9: #{tpu_custom_call.1} parent=5 // pred_check
        _
      $region10: #{tpu_custom_call.1} parent=5 // pred_check_branch
        %234 = sbr.rel (%p231) target = $region12
      $region11: #{tpu_custom_call.1} parent=5 // pred_region
        %s235 = ssub.s32 %s17, 1
        // Predicated region
        $region13: #{tpu_custom_call.1} parent=11 // pred_check
          %p236 = pneg %p90
        $region14: #{tpu_custom_call.1} parent=11 // pred_check_branch
          %238 = sbr.rel (%p236) target = $region16
        $region15: #{tpu_custom_call.1} parent=11 // pred_region
          _
        $region16: #{tpu_custom_call.1} parent=11 // pred_fallthru
          _
        // Predicated region
        $region17: #{tpu_custom_call.1} parent=11 // pred_check
          %p239 = pneg %p111
        $region18: #{tpu_custom_call.1} parent=11 // pred_check_branch
          %241 = sbr.rel (%p239) target = $region20
        $region19: #{tpu_custom_call.1} parent=11 // pred_region
          _
        $region20: #{tpu_custom_call.1} parent=11 // pred_fallthru
          _
        // Predicated region
        $region21: #{tpu_custom_call.1} parent=11 // pred_check
          %p242 = pneg %p132
        $region22: #{tpu_custom_call.1} parent=11 // pred_check_branch
          %244 = sbr.rel (%p242) target = $region24
        $region23: #{tpu_custom_call.1} parent=11 // pred_region
          _
        $region24: #{tpu_custom_call.1} parent=11 // pred_fallthru
          _
        // Predicated region
        $region25: #{tpu_custom_call.1} parent=11 // pred_check
          %p245 = pneg %p153
        $region26: #{tpu_custom_call.1} parent=11 // pred_check_branch
          %247 = sbr.rel (%p245) target = $region28
        $region27: #{tpu_custom_call.1} parent=11 // pred_region
          _
        $region28: #{tpu_custom_call.1} parent=11 // pred_fallthru
          _
        // Predicated region
        $region29: #{tpu_custom_call.1} parent=11 // pred_check
          %p248 = pneg %p174
        $region30: #{tpu_custom_call.1} parent=11 // pred_check_branch
          %250 = sbr.rel (%p248) target = $region32
        $region31: #{tpu_custom_call.1} parent=11 // pred_region
          _
        $region32: #{tpu_custom_call.1} parent=11 // pred_fallthru
          _
        // Predicated region
        $region33: #{tpu_custom_call.1} parent=11 // pred_check
          %p251 = pneg %p195
        $region34: #{tpu_custom_call.1} parent=11 // pred_check_branch
          %253 = sbr.rel (%p251) target = $region36
        $region35: #{tpu_custom_call.1} parent=11 // pred_region
          _
        $region36: #{tpu_custom_call.1} parent=11 // pred_fallthru
          _
      $region12: #{tpu_custom_call.1} parent=5 // pred_fallthru
        _
      %p254 = scmp.lt.s32.totalorder %s17, 2
      // Predicated region
      $region37: #{tpu_custom_call.1} parent=5 // pred_check
        %p255 = pneg %p254
      $region38: #{tpu_custom_call.1} parent=5 // pred_check_branch
        %257 = sbr.rel (%p255) target = $region40
      $region39: #{tpu_custom_call.1} parent=5 // pred_region
        // Predicated region
        $region41: #{tpu_custom_call.1} parent=39 // pred_check
          %p258 = pneg %p37
        $region42: #{tpu_custom_call.1} parent=39 // pred_check_branch
          %260 = sbr.rel (%p258) target = $region44
        $region43: #{tpu_custom_call.1} parent=39 // pred_region
          %p261 = scmp.lt.s32.totalorder %s17, 1
          %s262 = scalar_select %p261, %s17, 1
          %s263 = smul.addr %s262, 4
          %s264 = smul.addr %s263, 4
          %s265 = scalar_lea.vmem %s0, %s264
        $region44: #{tpu_custom_call.1} parent=39 // pred_fallthru
          _
        // Predicated region
        $region45: #{tpu_custom_call.1} parent=39 // pred_check
          %p266 = pneg %p63
        $region46: #{tpu_custom_call.1} parent=39 // pred_check_branch
          %268 = sbr.rel (%p266) target = $region48
        $region47: #{tpu_custom_call.1} parent=39 // pred_region
          %p269 = scmp.lt.s32.totalorder %s17, 1
          %s270 = scalar_select %p269, %s17, 1
          %s271 = smul.addr %s270, 2
          %s272 = smul.addr %s271, 2
          %s273 = scalar_lea.vmem %s1, %s272
        $region48: #{tpu_custom_call.1} parent=39 // pred_fallthru
          _
      $region40: #{tpu_custom_call.1} parent=5 // pred_fallthru
        _
      %p274 = scmp.le.s32.totalorder 1, %s17
      %p275 = scmp.lt.s32.totalorder %s17, 3
      %p276 = pnand %p274, %p275
      %p277 = pneg %p276
      // Predicated region
      $region49: #{tpu_custom_call.1} parent=5 // pred_check
        _
      $region50: #{tpu_custom_call.1} parent=5 // pred_check_branch
        %279 = sbr.rel (%p276) target = $region52
      $region51: #{tpu_custom_call.1} parent=5 // pred_region
        %s280 = ssub.s32 %s17, 1
        %p281 = scmp.lt.s32.totalorder %s22, 1
        %s282 = scalar_select %p281, %s22, 1
        %s283 = smul.addr %s282, 4
        %s284 = smul.addr %s283, 4
        %s285 = scalar_lea.vmem %s0, %s284
        %p286 = pneg %p43
        %p287 = pneg %p40
        %p288 = scmp.lt.s32.totalorder %s22, 1
        %s289 = scalar_select %p288, %s22, 1
        %s290 = smul.addr %s289, 2
        %s291 = smul.addr %s290, 2
        %s292 = scalar_lea.vmem %s1, %s291
        %p293 = pneg %p69
        %p294 = pneg %p66
        %p295 = pneg %p90
        %p296 = pneg %p87
        %p297 = pneg %p111
        %p298 = pneg %p108
        %p299 = pneg %p132
        %p300 = pneg %p129
        %p301 = pneg %p153
        %p302 = pneg %p150
        %p303 = pneg %p174
        %p304 = pneg %p171
        %p305 = pneg %p195
        %p306 = pneg %p192
        %p307 = pneg %p221
        %p308 = pneg %p218
        %s309 = sand.u32 %s208, 1
        %s310 = scalar_lea.sflag [#allocation3], %s309
        %s311 = sand.u32 %s208, 1
        %s312 = smul.addr %s311, 8
        %s313 = scalar_lea.vmem [#allocation2], %s312
        %p314 = scmp.lt.s32.totalorder %s22, 1
        %s315 = scalar_select %p314, %s22, 1
        %s316 = smul.addr %s315, 4
        %s317 = smul.addr %s316, 4
        %s318 = scalar_lea.vmem %s0, %s317
        %p319 = scmp.lt.s32.totalorder %s22, 1
        %s320 = scalar_select %p319, %s22, 1
        %s321 = smul.addr %s320, 2
        %s322 = smul.addr %s321, 2
        %s323 = scalar_lea.vmem %s1, %s322
        %v325 = vld [vmem:[%s318] sm:$0xf]
        %v326 = vld [vmem:[%s318 + $0x4] sm:$0xf]
        %v327 = vld [vmem:[%s318 + $0x8] sm:$0xf]
        %v328 = vld [vmem:[%s318 + $0xc] sm:$0xf]
        %v329 = vld [vmem:[%s2] sm:$0xf]
        %v334 = vunpack.c.l.b16 %v325
        %v335 = vunpack.c.l.b16 %v326
        %v336 = vunpack.c.l.b16 %v327
        %v337 = vunpack.c.l.b16 %v328
        %v338 = vpack.c.b16 %v335, %v334
        %v339 = vpack.c.b16 %v337, %v336
        %vm340 = vcmask 64512
        %v342 = vsel %vm340, %v338, 0
        %v345 = vsel %vm340, %v339, 0
        %vm347 = vcmask 1043456
        %v349 = vsel %vm347, %v329, 0
        %351 = vmatprep.subr.bf16.mxu0 0
        %352 = vmatpush1.bf16.msra.mxu0 0
        %353 = vmatprep.subr.bf16.mxu0 0
        %354 = vmatpush1.bf16.msra.mxu0 0
        %355 = vmatprep.subr.bf16.mxu0 0
        %356 = vmatpush1.bf16.msra.mxu0 0
        %357 = vmatprep.subr.bf16.mxu0 0
        %358 = vmatpush1.bf16.msra.mxu0 0
        %359 = vmatprep.subr.bf16.mxu0 0
        %360 = vmatpush1.bf16.msra.mxu0 0
        %361 = vmatprep.subr.bf16.mxu0 0
        %362 = vmatpush1.bf16.msra.mxu0 0
        %363 = vmatprep.subr.bf16.mxu0 0
        %364 = vmatpush1.bf16.msra.mxu0 0
        %365 = vmatprep.subr.bf16.mxu0 0
        %366 = vmatpush1.bf16.msra.mxu0 %v349
        %367 = vmatprep.subr.bf16.mxu0 0
        %368 = vmatpush2.bf16.msra.mxu0 0
        %369 = vmatprep.subr.bf16.mxu0 0
        %370 = vmatpush2.bf16.msra.mxu0 0
        %371 = vmatprep.subr.bf16.mxu0 0
        %372 = vmatpush2.bf16.msra.mxu0 0
        %373 = vmatprep.subr.bf16.mxu0 0
        %374 = vmatpush2.bf16.msra.mxu0 0
        %375 = vmatprep.subr.bf16.mxu0 0
        %376 = vmatpush2.bf16.msra.mxu0 0
        %377 = vmatprep.subr.bf16.mxu0 0
        %378 = vmatpush2.bf16.msra.mxu0 0
        %379 = vmatprep.subr.bf16.mxu0 0
        %380 = vmatpush2.bf16.msra.mxu0 0
        %381 = vmatprep.subr.bf16.mxu0 0
        %382 = vmatpush2.bf16.msra.mxu0 0
        %383 = vmatprep.mubr.bf16.mxu0 0
        %384 = vmatmul.mubr.bf16.gmra.mxu0 %v342
        %v385 = vpop.f32.mrf.mxu0
        %v386 = vadd.f32 0.0, %v385
        %v387 = vpop.f32.mrf.mxu0
        %v388 = vpop.f32.mrf.mxu0
        %v389 = vadd.f32 0.0, %v388
        %v390 = vpop.f32.mrf.mxu0
        %391 = vmatprep.mubr.bf16.mxu0 0
        %392 = vmatmul.mubr.bf16.gmra.mxu0 %v345
        %v393 = vpop.f32.mrf.mxu0
        %v394 = vadd.f32 0.0, %v393
        %v395 = vpop.f32.mrf.mxu0
        %v396 = vpop.f32.mrf.mxu0
        %v397 = vadd.f32 0.0, %v396
        %v398 = vpop.f32.mrf.mxu0
        %399 = vdwg.mxu0
        %v400 = vpack.c.bf16 %v386, %v386
        %v401 = vmul.f32 %v386, 0.5333333
        %v402 = vmul.f32 %v386, 0.46666667
        %v404 = vrot.slane %v402, 4
        %v406 = vadd.f32 %v401, %v404
        %v407 = vpack.c.bf16 %v406, %v406
        %v408 = vmul.f32 %v386, 0.06666666
        %v409 = vmul.f32 %v386, 0.93333334
        %v411 = vrot.slane %v409, 4
        %v413 = vadd.f32 %v408, %v411
        %v414 = vpack.c.bf16 %v413, %v413
        %v415 = vmul.f32 %v386, 0.6
        %v416 = vmul.f32 %v389, 0.4
        %v418 = vrot.slane %v416, 4
        %v420 = vadd.f32 %v415, %v418
        %v421 = vpack.c.bf16 %v420, %v420
        %v422 = vmul.f32 %v386, 0.13333333
        %v423 = vmul.f32 %v389, 0.8666667
        %v425 = vrot.slane %v423, 4
        %v427 = vadd.f32 %v422, %v425
        %v428 = vpack.c.bf16 %v427, %v427
        %v429 = vmul.f32 %v389, 0.6666666
        %v430 = vmul.f32 %v389, 0.33333334
        %v432 = vrot.slane %v430, 4
        %v434 = vadd.f32 %v429, %v432
        %v435 = vpack.c.bf16 %v434, %v434
        %v436 = vmul.f32 %v389, 0.19999999
        %v437 = vmul.f32 %v389, 0.8
        %v439 = vrot.slane %v437, 4
        %v441 = vadd.f32 %v436, %v439
        %v442 = vpack.c.bf16 %v441, %v441
        %v443 = vmul.f32 %v389, 0.73333335
        %v444 = vmul.f32 %v394, 0.26666668
        %v446 = vrot.slane %v444, 4
        %v448 = vadd.f32 %v443, %v446
        %v449 = vpack.c.bf16 %v448, %v448
        %v450 = vmul.f32 %v389, 0.26666665
        %v451 = vmul.f32 %v394, 0.73333335
        %v453 = vrot.slane %v451, 4
        %v455 = vadd.f32 %v450, %v453
        %v456 = vpack.c.bf16 %v455, %v455
        %v457 = vmul.f32 %v394, 0.8
        %v458 = vmul.f32 %v394, 0.2
        %v460 = vrot.slane %v458, 4
        %v462 = vadd.f32 %v457, %v460
        %v463 = vpack.c.bf16 %v462, %v462
        %v464 = vmul.f32 %v394, 0.3333333
        %v465 = vmul.f32 %v394, 0.6666667
        %v467 = vrot.slane %v465, 4
        %v469 = vadd.f32 %v464, %v467
        %v470 = vpack.c.bf16 %v469, %v469
        %v471 = vmul.f32 %v394, 0.8666667
        %v472 = vmul.f32 %v397, 0.13333334
        %v474 = vrot.slane %v472, 4
        %v476 = vadd.f32 %v471, %v474
        %v477 = vpack.c.bf16 %v476, %v476
        %v478 = vmul.f32 %v394, 0.39999998
        %v479 = vmul.f32 %v397, 0.6
        %v481 = vrot.slane %v479, 4
        %v483 = vadd.f32 %v478, %v481
        %v484 = vpack.c.bf16 %v483, %v483
        %v485 = vmul.f32 %v397, 0.93333334
        %v486 = vmul.f32 %v397, 0.06666667
        %v488 = vrot.slane %v486, 4
        %v490 = vadd.f32 %v485, %v488
        %v491 = vpack.c.bf16 %v490, %v490
        %v492 = vmul.f32 %v397, 0.46666664
        %v493 = vmul.f32 %v397, 0.53333336
        %v495 = vrot.slane %v493, 4
        %v497 = vadd.f32 %v492, %v495
        %v498 = vpack.c.bf16 %v497, %v497
        %v499 = vpack.c.bf16 %v397, %v397
        %501 = vrot.lane.b32.xlu0 %v407, 16
        %v502 = vpop.permute.xlu0 %501
        %504 = vrot.lane.b32.xlu0 %v414, 32
        %v505 = vpop.permute.xlu0 %504
        %v507 = vrot.slane %v421, 2
        %508 = vrot.lane.b32.xlu0 %v507, 48
        %v509 = vpop.permute.xlu0 %508
        %v511 = vrot.slane %v428, 2
        %512 = vrot.lane.b32.xlu0 %v511, 64
        %v513 = vpop.permute.xlu0 %512
        %515 = vrot.lane.b32.xlu0 %v435, 80
        %v516 = vpop.permute.xlu0 %515
        %518 = vrot.lane.b32.xlu0 %v442, 96
        %v519 = vpop.permute.xlu0 %518
        %v521 = vrot.slane %v449, 2
        %522 = vrot.lane.b32.xlu0 %v521, 112
        %v523 = vpop.permute.xlu0 %522
        %v525 = vrot.slane %v456, 2
        %527 = vrot.lane.b32.xlu0 %v463, 16
        %v528 = vpop.permute.xlu0 %527
        %530 = vrot.lane.b32.xlu0 %v470, 32
        %v531 = vpop.permute.xlu0 %530
        %v533 = vrot.slane %v477, 2
        %534 = vrot.lane.b32.xlu0 %v533, 48
        %v535 = vpop.permute.xlu0 %534
        %v537 = vrot.slane %v484, 2
        %538 = vrot.lane.b32.xlu0 %v537, 64
        %v539 = vpop.permute.xlu0 %538
        %541 = vrot.lane.b32.xlu0 %v491, 80
        %v542 = vpop.permute.xlu0 %541
        %544 = vrot.lane.b32.xlu0 %v498, 96
        %v545 = vpop.permute.xlu0 %544
        %v547 = vrot.slane %v499, 2
        %548 = vrot.lane.b32.xlu0 %v547, 112
        %v549 = vpop.permute.xlu0 %548
        %vm550 = vcmask 130048
        %v553 = vsel %vm550, %v400, %v502
        %vm554 = vcmask 261120
        %v556 = vsel %vm554, %v553, %v505
        %vm557 = vcmask 392192
        %v559 = vsel %vm557, %v556, %v509
        %vm560 = vcmask 523264
        %v562 = vsel %vm560, %v559, %v513
        %vm563 = vcmask 654336
        %v565 = vsel %vm563, %v562, %v516
        %vm566 = vcmask 785408
        %v568 = vsel %vm566, %v565, %v519
        %vm569 = vcmask 916480
        %v571 = vsel %vm569, %v568, %v523
        %v574 = vsel %vm550, %v525, %v528
        %v576 = vsel %vm554, %v574, %v531
        %v578 = vsel %vm557, %v576, %v535
        %v580 = vsel %vm560, %v578, %v539
        %v582 = vsel %vm563, %v580, %v542
        %v584 = vsel %vm566, %v582, %v545
        %v586 = vsel %vm569, %v584, %v549
        %v587 = vld [vmem:[%s323] sm:$0xf]
        %v590 = vunpack.c.l.s4 1983009808
        %v591 = vunpack.c.0.s8 %v590
        %v592 = vlaneseq
        %v593 = vshrl.u32 %v592, 7
        %v594 = vsub.s32 %v591, %v593
        %v595 = vrot.slane %v587, %v594
        %v596 = vcombine.high %v595, %v595
        %v599 = vrot.slane %v571, 6
        %v600 = vrot.slane %v586, 6
        %vm601 = vcmask 1041408
        %v604 = vsel %vm601, %v595, %v599
        %v607 = vsel %vm601, %v596, %v600
        %609 = vrot.lane.b32.xlu0 %v607, 17
        %v610 = vpop.permute.xlu0 %609
        %612 = vrot.lane.b32.xlu0 %v604, 17
        %v613 = vpop.permute.xlu0 %612
        %vm614 = vcmask 138240
        %v615 = vsel %vm614, %v613, %v610
        %vm617 = vcmask 138240
        %v620 = vsel %vm617, %v610, %v613
        %v622 = vld [vmem:[%s3] sm:$0x11]
        %v624 = vunpack.c.l.b16 %v622
        %v625 = vunpack.c.h.b16 %v622
        %v626 = vpack.c.b16 %v624, %v624
        %v627 = vpack.c.b16 %v625, %v625
        %v629 = vpack.i.b16 %v626, %v626
        %v631 = vlaneseq
        %v632 = vshrl.u32 %v631, 7
        %v633 = vsub.s32 0, %v632
        %v634 = vrot.slane %v629, %v633
        %v636 = vpack.i.b16 %v627, %v627
        %v638 = vlaneseq
        %v639 = vshrl.u32 %v638, 7
        %v640 = vsub.s32 0, %v639
        %v641 = vrot.slane %v636, %v640
        %v642 = vmul.bf16 %v620, %v634
        %v643 = vmul.bf16 %v615, %v641
        %v644 = vld [vmem:[%s4] sm:$0x3]
        %645 = vrot.lane.b32.xlu0 %v607, 16
        %v646 = vpop.permute.xlu0 %645
        %647 = vrot.lane.b32.xlu0 %v604, 16
        %v648 = vpop.permute.xlu0 %647
        %vm649 = vcmask 130048
        %v650 = vsel %vm649, %v648, %v646
        %v654 = vsel %vm550, %v646, %v648
        %v656 = vshrl.u32 %v626, 16
        %v657 = vpack.i.b16 %v656, %v656
        %v659 = vlaneseq
        %v660 = vshrl.u32 %v659, 7
        %v661 = vsub.s32 0, %v660
        %v662 = vrot.slane %v657, %v661
        %v663 = vshrl.u32 %v627, 16
        %v664 = vpack.i.b16 %v663, %v663
        %v666 = vlaneseq
        %v667 = vshrl.u32 %v666, 7
        %v668 = vsub.s32 0, %v667
        %v669 = vrot.slane %v664, %v668
        %v670 = vmul.bf16 %v654, %v662
        %v671 = vmul.bf16 %v650, %v669
        %s672 = scalar_lea.vmem %s4, 2
        %v673 = vld [vmem:[%s672] sm:$0x3]
        %v675 = vsel %vm340, %v673, 0
        %v678 = vsel %vm347, %v670, 0
        %v681 = vsel %vm347, %v671, 0
        %683 = vmatprep.subr.bf16.mxu0 0
        %684 = vmatpush1.bf16.msra.mxu0 0
        %685 = vmatprep.subr.bf16.mxu0 0
        %686 = vmatpush1.bf16.msra.mxu0 0
        %687 = vmatprep.subr.bf16.mxu0 0
        %688 = vmatpush1.bf16.msra.mxu0 0
        %689 = vmatprep.subr.bf16.mxu0 0
        %690 = vmatpush1.bf16.msra.mxu0 0
        %691 = vmatprep.subr.bf16.mxu0 0
        %692 = vmatpush1.bf16.msra.mxu0 0
        %693 = vmatprep.subr.bf16.mxu0 0
        %694 = vmatpush1.bf16.msra.mxu0 0
        %695 = vmatprep.subr.bf16.mxu0 0
        %696 = vmatpush1.bf16.msra.mxu0 0
        %697 = vmatprep.subr.bf16.mxu0 %v681
        %698 = vmatpush1.bf16.msra.mxu0 %v678
        %699 = vmatprep.subr.bf16.mxu0 0
        %700 = vmatpush2.bf16.msra.mxu0 0
        %701 = vmatprep.subr.bf16.mxu0 0
        %702 = vmatpush2.bf16.msra.mxu0 0
        %703 = vmatprep.subr.bf16.mxu0 0
        %704 = vmatpush2.bf16.msra.mxu0 0
        %705 = vmatprep.subr.bf16.mxu0 0
        %706 = vmatpush2.bf16.msra.mxu0 0
        %707 = vmatprep.subr.bf16.mxu0 0
        %708 = vmatpush2.bf16.msra.mxu0 0
        %709 = vmatprep.subr.bf16.mxu0 0
        %710 = vmatpush2.bf16.msra.mxu0 0
        %711 = vmatprep.subr.bf16.mxu0 0
        %712 = vmatpush2.bf16.msra.mxu0 0
        %713 = vmatprep.subr.bf16.mxu0 0
        %714 = vmatpush2.bf16.msra.mxu0 0
        %715 = vmatprep.mubr.bf16.mxu0 0
        %716 = vmatmul.mubr.bf16.gmra.mxu0 %v675
        %v717 = vpop.f32.mrf.mxu0
        %v718 = vadd.f32 0.0, %v717
        %v719 = vpop.f32.mrf.mxu0
        %v720 = vadd.f32 0.0, %v719
        %v721 = vpop.f32.mrf.mxu0
        %v722 = vpop.f32.mrf.mxu0
        %723 = vdwg.mxu0
        %v725 = vsel %vm340, %v644, 0
        %v728 = vsel %vm347, %v642, 0
        %v731 = vsel %vm347, %v643, 0
        %733 = vmatprep.subr.bf16.mxu0 0
        %734 = vmatpush1.bf16.msra.mxu0 0
        %735 = vmatprep.subr.bf16.mxu0 0
        %736 = vmatpush1.bf16.msra.mxu0 0
        %737 = vmatprep.subr.bf16.mxu0 0
        %738 = vmatpush1.bf16.msra.mxu0 0
        %739 = vmatprep.subr.bf16.mxu0 0
        %740 = vmatpush1.bf16.msra.mxu0 0
        %741 = vmatprep.subr.bf16.mxu0 0
        %742 = vmatpush1.bf16.msra.mxu0 0
        %743 = vmatprep.subr.bf16.mxu0 0
        %744 = vmatpush1.bf16.msra.mxu0 0
        %745 = vmatprep.subr.bf16.mxu0 0
        %746 = vmatpush1.bf16.msra.mxu0 0
        %747 = vmatprep.subr.bf16.mxu0 %v731
        %748 = vmatpush1.bf16.msra.mxu0 %v728
        %749 = vmatprep.subr.bf16.mxu0 0
        %750 = vmatpush2.bf16.msra.mxu0 0
        %751 = vmatprep.subr.bf16.mxu0 0
        %752 = vmatpush2.bf16.msra.mxu0 0
        %753 = vmatprep.subr.bf16.mxu0 0
        %754 = vmatpush2.bf16.msra.mxu0 0
        %755 = vmatprep.subr.bf16.mxu0 0
        %756 = vmatpush2.bf16.msra.mxu0 0
        %757 = vmatprep.subr.bf16.mxu0 0
        %758 = vmatpush2.bf16.msra.mxu0 0
        %759 = vmatprep.subr.bf16.mxu0 0
        %760 = vmatpush2.bf16.msra.mxu0 0
        %761 = vmatprep.subr.bf16.mxu0 0
        %762 = vmatpush2.bf16.msra.mxu0 0
        %763 = vmatprep.subr.bf16.mxu0 0
        %764 = vmatpush2.bf16.msra.mxu0 0
        %765 = vmatprep.mubr.bf16.mxu0 0
        %766 = vmatmul.mubr.bf16.gmra.mxu0 %v725
        %v767 = vpop.f32.mrf.mxu0
        %v768 = vadd.f32 %v718, %v767
        %v769 = vpop.f32.mrf.mxu0
        %v770 = vadd.f32 %v720, %v769
        %v771 = vpop.f32.mrf.mxu0
        %v772 = vpop.f32.mrf.mxu0
        %773 = vdwg.mxu0
        %774 = vrot.lane.b32.xlu0 %v607, 15
        %v775 = vpop.permute.xlu0 %774
        %776 = vrot.lane.b32.xlu0 %v604, 15
        %v777 = vpop.permute.xlu0 %776
        %vm778 = vcmask 121856
        %v779 = vsel %vm778, %v777, %v775
        %vm781 = vcmask 121856
        %v784 = vsel %vm781, %v775, %v777
        %v786 = vld [vmem:[%s3] sm:$0x22]
        %v788 = vunpack.c.l.b16 %v786
        %v789 = vunpack.c.h.b16 %v786
        %v790 = vpack.c.b16 %v788, %v788
        %v791 = vpack.c.b16 %v789, %v789
        %v793 = vpack.i.b16 %v790, %v790
        %v795 = vlaneseq
        %v796 = vshrl.u32 %v795, 7
        %v797 = vsub.s32 1, %v796
        %v798 = vrot.slane %v793, %v797
        %v800 = vpack.i.b16 %v791, %v791
        %v802 = vlaneseq
        %v803 = vshrl.u32 %v802, 7
        %v804 = vsub.s32 1, %v803
        %v805 = vrot.slane %v800, %v804
        %v806 = vmul.bf16 %v784, %v798
        %v807 = vmul.bf16 %v779, %v805
        %s808 = scalar_lea.vmem %s4, 4
        %v809 = vld [vmem:[%s808] sm:$0x3]
        %v811 = vsel %vm340, %v809, 0
        %v814 = vsel %vm347, %v806, 0
        %v817 = vsel %vm347, %v807, 0
        %819 = vmatprep.subr.bf16.mxu0 0
        %820 = vmatpush1.bf16.msra.mxu0 0
        %821 = vmatprep.subr.bf16.mxu0 0
        %822 = vmatpush1.bf16.msra.mxu0 0
        %823 = vmatprep.subr.bf16.mxu0 0
        %824 = vmatpush1.bf16.msra.mxu0 0
        %825 = vmatprep.subr.bf16.mxu0 0
        %826 = vmatpush1.bf16.msra.mxu0 0
        %827 = vmatprep.subr.bf16.mxu0 0
        %828 = vmatpush1.bf16.msra.mxu0 0
        %829 = vmatprep.subr.bf16.mxu0 0
        %830 = vmatpush1.bf16.msra.mxu0 0
        %831 = vmatprep.subr.bf16.mxu0 0
        %832 = vmatpush1.bf16.msra.mxu0 0
        %833 = vmatprep.subr.bf16.mxu0 %v817
        %834 = vmatpush1.bf16.msra.mxu0 %v814
        %835 = vmatprep.subr.bf16.mxu0 0
        %836 = vmatpush2.bf16.msra.mxu0 0
        %837 = vmatprep.subr.bf16.mxu0 0
        %838 = vmatpush2.bf16.msra.mxu0 0
        %839 = vmatprep.subr.bf16.mxu0 0
        %840 = vmatpush2.bf16.msra.mxu0 0
        %841 = vmatprep.subr.bf16.mxu0 0
        %842 = vmatpush2.bf16.msra.mxu0 0
        %843 = vmatprep.subr.bf16.mxu0 0
        %844 = vmatpush2.bf16.msra.mxu0 0
        %845 = vmatprep.subr.bf16.mxu0 0
        %846 = vmatpush2.bf16.msra.mxu0 0
        %847 = vmatprep.subr.bf16.mxu0 0
        %848 = vmatpush2.bf16.msra.mxu0 0
        %849 = vmatprep.subr.bf16.mxu0 0
        %850 = vmatpush2.bf16.msra.mxu0 0
        %851 = vmatprep.mubr.bf16.mxu0 0
        %852 = vmatmul.mubr.bf16.gmra.mxu0 %v811
        %v853 = vpop.f32.mrf.mxu0
        %v854 = vadd.f32 0.0, %v853
        %v855 = vpop.f32.mrf.mxu0
        %v856 = vadd.f32 0.0, %v855
        %v857 = vpop.f32.mrf.mxu0
        %v858 = vpop.f32.mrf.mxu0
        %859 = vdwg.mxu0
        %v860 = vadd.f32 %v768, %v854
        %v861 = vadd.f32 %v770, %v856
        %862 = vrot.lane.b32.xlu0 %v607, 1
        %v863 = vpop.permute.xlu0 %862
        %864 = vrot.lane.b32.xlu0 %v604, 1
        %v865 = vpop.permute.xlu0 %864
        %vm866 = vcmask 7168
        %v867 = vsel %vm866, %v865, %v863
        %vm869 = vcmask 7168
        %v872 = vsel %vm869, %v863, %v865
        %v874 = vshrl.u32 %v790, 16
        %v875 = vpack.i.b16 %v874, %v874
        %v877 = vlaneseq
        %v878 = vshrl.u32 %v877, 7
        %v879 = vsub.s32 1, %v878
        %v880 = vrot.slane %v875, %v879
        %v881 = vshrl.u32 %v791, 16
        %v882 = vpack.i.b16 %v881, %v881
        %v884 = vlaneseq
        %v885 = vshrl.u32 %v884, 7
        %v886 = vsub.s32 1, %v885
        %v887 = vrot.slane %v882, %v886
        %v888 = vmul.bf16 %v872, %v880
        %v889 = vmul.bf16 %v867, %v887
        %s890 = scalar_lea.vmem %s4, 6
        %v891 = vld [vmem:[%s890] sm:$0x3]
        %v893 = vsel %vm340, %v891, 0
        %v896 = vsel %vm347, %v888, 0
        %v899 = vsel %vm347, %v889, 0
        %901 = vmatprep.subr.bf16.mxu0 0
        %902 = vmatpush1.bf16.msra.mxu0 0
        %903 = vmatprep.subr.bf16.mxu0 0
        %904 = vmatpush1.bf16.msra.mxu0 0
        %905 = vmatprep.subr.bf16.mxu0 0
        %906 = vmatpush1.bf16.msra.mxu0 0
        %907 = vmatprep.subr.bf16.mxu0 0
        %908 = vmatpush1.bf16.msra.mxu0 0
        %909 = vmatprep.subr.bf16.mxu0 0
        %910 = vmatpush1.bf16.msra.mxu0 0
        %911 = vmatprep.subr.bf16.mxu0 0
        %912 = vmatpush1.bf16.msra.mxu0 0
        %913 = vmatprep.subr.bf16.mxu0 0
        %914 = vmatpush1.bf16.msra.mxu0 0
        %915 = vmatprep.subr.bf16.mxu0 %v899
        %916 = vmatpush1.bf16.msra.mxu0 %v896
        %917 = vmatprep.subr.bf16.mxu0 0
        %918 = vmatpush2.bf16.msra.mxu0 0
        %919 = vmatprep.subr.bf16.mxu0 0
        %920 = vmatpush2.bf16.msra.mxu0 0
        %921 = vmatprep.subr.bf16.mxu0 0
        %922 = vmatpush2.bf16.msra.mxu0 0
        %923 = vmatprep.subr.bf16.mxu0 0
        %924 = vmatpush2.bf16.msra.mxu0 0
        %925 = vmatprep.subr.bf16.mxu0 0
        %926 = vmatpush2.bf16.msra.mxu0 0
        %927 = vmatprep.subr.bf16.mxu0 0
        %928 = vmatpush2.bf16.msra.mxu0 0
        %929 = vmatprep.subr.bf16.mxu0 0
        %930 = vmatpush2.bf16.msra.mxu0 0
        %931 = vmatprep.subr.bf16.mxu0 0
        %932 = vmatpush2.bf16.msra.mxu0 0
        %933 = vmatprep.mubr.bf16.mxu0 0
        %934 = vmatmul.mubr.bf16.gmra.mxu0 %v893
        %v935 = vpop.f32.mrf.mxu0
        %v936 = vadd.f32 0.0, %v935
        %v937 = vpop.f32.mrf.mxu0
        %v938 = vadd.f32 0.0, %v937
        %v939 = vpop.f32.mrf.mxu0
        %v940 = vpop.f32.mrf.mxu0
        %941 = vdwg.mxu0
        %v942 = vadd.f32 %v860, %v936
        %v943 = vadd.f32 %v861, %v938
        %s944 = scalar_lea.vmem %s4, 8
        %v945 = vld [vmem:[%s944] sm:$0x3]
        %v947 = vsel %vm340, %v945, 0
        %v949 = vsel %vm347, %v604, 0
        %v951 = vsel %vm347, %v607, 0
        %953 = vmatprep.subr.bf16.mxu0 0
        %954 = vmatpush1.bf16.msra.mxu0 0
        %955 = vmatprep.subr.bf16.mxu0 0
        %956 = vmatpush1.bf16.msra.mxu0 0
        %957 = vmatprep.subr.bf16.mxu0 0
        %958 = vmatpush1.bf16.msra.mxu0 0
        %959 = vmatprep.subr.bf16.mxu0 0
        %960 = vmatpush1.bf16.msra.mxu0 0
        %961 = vmatprep.subr.bf16.mxu0 0
        %962 = vmatpush1.bf16.msra.mxu0 0
        %963 = vmatprep.subr.bf16.mxu0 0
        %964 = vmatpush1.bf16.msra.mxu0 0
        %965 = vmatprep.subr.bf16.mxu0 0
        %966 = vmatpush1.bf16.msra.mxu0 0
        %967 = vmatprep.subr.bf16.mxu0 %v951
        %968 = vmatpush1.bf16.msra.mxu0 %v949
        %969 = vmatprep.subr.bf16.mxu0 0
        %970 = vmatpush2.bf16.msra.mxu0 0
        %971 = vmatprep.subr.bf16.mxu0 0
        %972 = vmatpush2.bf16.msra.mxu0 0
        %973 = vmatprep.subr.bf16.mxu0 0
        %974 = vmatpush2.bf16.msra.mxu0 0
        %975 = vmatprep.subr.bf16.mxu0 0
        %976 = vmatpush2.bf16.msra.mxu0 0
        %977 = vmatprep.subr.bf16.mxu0 0
        %978 = vmatpush2.bf16.msra.mxu0 0
        %979 = vmatprep.subr.bf16.mxu0 0
        %980 = vmatpush2.bf16.msra.mxu0 0
        %981 = vmatprep.subr.bf16.mxu0 0
        %982 = vmatpush2.bf16.msra.mxu0 0
        %983 = vmatprep.subr.bf16.mxu0 0
        %984 = vmatpush2.bf16.msra.mxu0 0
        %985 = vmatprep.mubr.bf16.mxu0 0
        %986 = vmatmul.mubr.bf16.gmra.mxu0 %v947
        %v987 = vpop.f32.mrf.mxu0
        %v988 = vadd.f32 0.0, %v987
        %v989 = vpop.f32.mrf.mxu0
        %v990 = vadd.f32 0.0, %v989
        %v991 = vpop.f32.mrf.mxu0
        %v992 = vpop.f32.mrf.mxu0
        %993 = vdwg.mxu0
        %v994 = vadd.f32 %v942, %v988
        %v995 = vadd.f32 %v943, %v990
        %996 = vrot.lane.b32.xlu0 %v604, 127
        %v997 = vpop.permute.xlu0 %996
        %998 = vrot.lane.b32.xlu0 %v607, 127
        %v999 = vpop.permute.xlu0 %998
        %vm1000 = vcmask 1039360
        %v1001 = vsel %vm1000, %v997, %v999
        %vm1003 = vcmask 1039360
        %v1006 = vsel %vm1003, %v999, %v997
        %v1008 = vld [vmem:[%s3] sm:$0x44]
        %v1010 = vunpack.c.l.b16 %v1008
        %v1011 = vunpack.c.h.b16 %v1008
        %v1012 = vpack.c.b16 %v1010, %v1010
        %v1013 = vpack.c.b16 %v1011, %v1011
        %v1015 = vshrl.u32 %v1012, 16
        %v1016 = vpack.i.b16 %v1015, %v1015
        %v1018 = vlaneseq
        %v1019 = vshrl.u32 %v1018, 7
        %v1020 = vsub.s32 2, %v1019
        %v1021 = vrot.slane %v1016, %v1020
        %v1023 = vshrl.u32 %v1013, 16
        %v1024 = vpack.i.b16 %v1023, %v1023
        %v1026 = vlaneseq
        %v1027 = vshrl.u32 %v1026, 7
        %v1028 = vsub.s32 2, %v1027
        %v1029 = vrot.slane %v1024, %v1028
        %v1030 = vmul.bf16 %v1001, %v1021
        %v1031 = vmul.bf16 %v1006, %v1029
        %s1032 = scalar_lea.vmem %s4, 10
        %v1033 = vld [vmem:[%s1032] sm:$0x3]
        %v1035 = vsel %vm340, %v1033, 0
        %v1038 = vsel %vm347, %v1030, 0
        %v1041 = vsel %vm347, %v1031, 0
        %1043 = vmatprep.subr.bf16.mxu0 0
        %1044 = vmatpush1.bf16.msra.mxu0 0
        %1045 = vmatprep.subr.bf16.mxu0 0
        %1046 = vmatpush1.bf16.msra.mxu0 0
        %1047 = vmatprep.subr.bf16.mxu0 0
        %1048 = vmatpush1.bf16.msra.mxu0 0
        %1049 = vmatprep.subr.bf16.mxu0 0
        %1050 = vmatpush1.bf16.msra.mxu0 0
        %1051 = vmatprep.subr.bf16.mxu0 0
        %1052 = vmatpush1.bf16.msra.mxu0 0
        %1053 = vmatprep.subr.bf16.mxu0 0
        %1054 = vmatpush1.bf16.msra.mxu0 0
        %1055 = vmatprep.subr.bf16.mxu0 0
        %1056 = vmatpush1.bf16.msra.mxu0 0
        %1057 = vmatprep.subr.bf16.mxu0 %v1041
        %1058 = vmatpush1.bf16.msra.mxu0 %v1038
        %1059 = vmatprep.subr.bf16.mxu0 0
        %1060 = vmatpush2.bf16.msra.mxu0 0
        %1061 = vmatprep.subr.bf16.mxu0 0
        %1062 = vmatpush2.bf16.msra.mxu0 0
        %1063 = vmatprep.subr.bf16.mxu0 0
        %1064 = vmatpush2.bf16.msra.mxu0 0
        %1065 = vmatprep.subr.bf16.mxu0 0
        %1066 = vmatpush2.bf16.msra.mxu0 0
        %1067 = vmatprep.subr.bf16.mxu0 0
        %1068 = vmatpush2.bf16.msra.mxu0 0
        %1069 = vmatprep.subr.bf16.mxu0 0
        %1070 = vmatpush2.bf16.msra.mxu0 0
        %1071 = vmatprep.subr.bf16.mxu0 0
        %1072 = vmatpush2.bf16.msra.mxu0 0
        %1073 = vmatprep.subr.bf16.mxu0 0
        %1074 = vmatpush2.bf16.msra.mxu0 0
        %1075 = vmatprep.mubr.bf16.mxu0 0
        %1076 = vmatmul.mubr.bf16.gmra.mxu0 %v1035
        %v1077 = vpop.f32.mrf.mxu0
        %v1078 = vadd.f32 0.0, %v1077
        %v1079 = vpop.f32.mrf.mxu0
        %v1080 = vadd.f32 0.0, %v1079
        %v1081 = vpop.f32.mrf.mxu0
        %v1082 = vpop.f32.mrf.mxu0
        %1083 = vdwg.mxu0
        %v1084 = vadd.f32 %v994, %v1078
        %v1085 = vadd.f32 %v995, %v1080
        %1086 = vrot.lane.b32.xlu0 %v604, 113
        %v1087 = vpop.permute.xlu0 %1086
        %1088 = vrot.lane.b32.xlu0 %v607, 113
        %v1089 = vpop.permute.xlu0 %1088
        %vm1090 = vcmask 924672
        %v1091 = vsel %vm1090, %v1087, %v1089
        %vm1093 = vcmask 924672
        %v1096 = vsel %vm1093, %v1089, %v1087
        %v1098 = vld [vmem:[%s3] sm:$0x88]
        %v1100 = vunpack.c.l.b16 %v1098
        %v1101 = vunpack.c.h.b16 %v1098
        %v1102 = vpack.c.b16 %v1100, %v1100
        %v1103 = vpack.c.b16 %v1101, %v1101
        %v1105 = vpack.i.b16 %v1102, %v1102
        %v1107 = vlaneseq
        %v1108 = vshrl.u32 %v1107, 7
        %v1109 = vsub.s32 3, %v1108
        %v1110 = vrot.slane %v1105, %v1109
        %v1112 = vpack.i.b16 %v1103, %v1103
        %v1114 = vlaneseq
        %v1115 = vshrl.u32 %v1114, 7
        %v1116 = vsub.s32 3, %v1115
        %v1117 = vrot.slane %v1112, %v1116
        %v1118 = vmul.bf16 %v1091, %v1110
        %v1119 = vmul.bf16 %v1096, %v1117
        %s1120 = scalar_lea.vmem %s4, 12
        %v1121 = vld [vmem:[%s1120] sm:$0x3]
        %v1123 = vsel %vm340, %v1121, 0
        %v1126 = vsel %vm347, %v1118, 0
        %v1129 = vsel %vm347, %v1119, 0
        %1131 = vmatprep.subr.bf16.mxu0 0
        %1132 = vmatpush1.bf16.msra.mxu0 0
        %1133 = vmatprep.subr.bf16.mxu0 0
        %1134 = vmatpush1.bf16.msra.mxu0 0
        %1135 = vmatprep.subr.bf16.mxu0 0
        %1136 = vmatpush1.bf16.msra.mxu0 0
        %1137 = vmatprep.subr.bf16.mxu0 0
        %1138 = vmatpush1.bf16.msra.mxu0 0
        %1139 = vmatprep.subr.bf16.mxu0 0
        %1140 = vmatpush1.bf16.msra.mxu0 0
        %1141 = vmatprep.subr.bf16.mxu0 0
        %1142 = vmatpush1.bf16.msra.mxu0 0
        %1143 = vmatprep.subr.bf16.mxu0 0
        %1144 = vmatpush1.bf16.msra.mxu0 0
        %1145 = vmatprep.subr.bf16.mxu0 %v1129
        %1146 = vmatpush1.bf16.msra.mxu0 %v1126
        %1147 = vmatprep.subr.bf16.mxu0 0
        %1148 = vmatpush2.bf16.msra.mxu0 0
        %1149 = vmatprep.subr.bf16.mxu0 0
        %1150 = vmatpush2.bf16.msra.mxu0 0
        %1151 = vmatprep.subr.bf16.mxu0 0
        %1152 = vmatpush2.bf16.msra.mxu0 0
        %1153 = vmatprep.subr.bf16.mxu0 0
        %1154 = vmatpush2.bf16.msra.mxu0 0
        %1155 = vmatprep.subr.bf16.mxu0 0
        %1156 = vmatpush2.bf16.msra.mxu0 0
        %1157 = vmatprep.subr.bf16.mxu0 0
        %1158 = vmatpush2.bf16.msra.mxu0 0
        %1159 = vmatprep.subr.bf16.mxu0 0
        %1160 = vmatpush2.bf16.msra.mxu0 0
        %1161 = vmatprep.subr.bf16.mxu0 0
        %1162 = vmatpush2.bf16.msra.mxu0 0
        %1163 = vmatprep.mubr.bf16.mxu0 0
        %1164 = vmatmul.mubr.bf16.gmra.mxu0 %v1123
        %v1165 = vpop.f32.mrf.mxu0
        %v1166 = vadd.f32 0.0, %v1165
        %v1167 = vpop.f32.mrf.mxu0
        %v1168 = vadd.f32 0.0, %v1167
        %v1169 = vpop.f32.mrf.mxu0
        %v1170 = vpop.f32.mrf.mxu0
        %1171 = vdwg.mxu0
        %v1172 = vadd.f32 %v1084, %v1166
        %v1173 = vadd.f32 %v1085, %v1168
        %1174 = vrot.lane.b32.xlu0 %v604, 112
        %v1175 = vpop.permute.xlu0 %1174
        %1176 = vrot.lane.b32.xlu0 %v607, 112
        %v1177 = vpop.permute.xlu0 %1176
        %vm1178 = vcmask 916480
        %v1179 = vsel %vm1178, %v1175, %v1177
        %v1183 = vsel %vm569, %v1177, %v1175
        %v1185 = vshrl.u32 %v1102, 16
        %v1186 = vpack.i.b16 %v1185, %v1185
        %v1188 = vlaneseq
        %v1189 = vshrl.u32 %v1188, 7
        %v1190 = vsub.s32 3, %v1189
        %v1191 = vrot.slane %v1186, %v1190
        %v1192 = vshrl.u32 %v1103, 16
        %v1193 = vpack.i.b16 %v1192, %v1192
        %v1195 = vlaneseq
        %v1196 = vshrl.u32 %v1195, 7
        %v1197 = vsub.s32 3, %v1196
        %v1198 = vrot.slane %v1193, %v1197
        %v1199 = vmul.bf16 %v1179, %v1191
        %v1200 = vmul.bf16 %v1183, %v1198
        %s1201 = scalar_lea.vmem %s4, 14
        %v1202 = vld [vmem:[%s1201] sm:$0x3]
        %v1204 = vsel %vm340, %v1202, 0
        %v1207 = vsel %vm347, %v1199, 0
        %v1210 = vsel %vm347, %v1200, 0
        %1212 = vmatprep.subr.bf16.mxu0 0
        %1213 = vmatpush1.bf16.msra.mxu0 0
        %1214 = vmatprep.subr.bf16.mxu0 0
        %1215 = vmatpush1.bf16.msra.mxu0 0
        %1216 = vmatprep.subr.bf16.mxu0 0
        %1217 = vmatpush1.bf16.msra.mxu0 0
        %1218 = vmatprep.subr.bf16.mxu0 0
        %1219 = vmatpush1.bf16.msra.mxu0 0
        %1220 = vmatprep.subr.bf16.mxu0 0
        %1221 = vmatpush1.bf16.msra.mxu0 0
        %1222 = vmatprep.subr.bf16.mxu0 0
        %1223 = vmatpush1.bf16.msra.mxu0 0
        %1224 = vmatprep.subr.bf16.mxu0 0
        %1225 = vmatpush1.bf16.msra.mxu0 0
        %1226 = vmatprep.subr.bf16.mxu0 %v1210
        %1227 = vmatpush1.bf16.msra.mxu0 %v1207
        %1228 = vmatprep.subr.bf16.mxu0 0
        %1229 = vmatpush2.bf16.msra.mxu0 0
        %1230 = vmatprep.subr.bf16.mxu0 0
        %1231 = vmatpush2.bf16.msra.mxu0 0
        %1232 = vmatprep.subr.bf16.mxu0 0
        %1233 = vmatpush2.bf16.msra.mxu0 0
        %1234 = vmatprep.subr.bf16.mxu0 0
        %1235 = vmatpush2.bf16.msra.mxu0 0
        %1236 = vmatprep.subr.bf16.mxu0 0
        %1237 = vmatpush2.bf16.msra.mxu0 0
        %1238 = vmatprep.subr.bf16.mxu0 0
        %1239 = vmatpush2.bf16.msra.mxu0 0
        %1240 = vmatprep.subr.bf16.mxu0 0
        %1241 = vmatpush2.bf16.msra.mxu0 0
        %1242 = vmatprep.subr.bf16.mxu0 0
        %1243 = vmatpush2.bf16.msra.mxu0 0
        %1244 = vmatprep.mubr.bf16.mxu0 0
        %1245 = vmatmul.mubr.bf16.gmra.mxu0 %v1204
        %v1246 = vpop.f32.mrf.mxu0
        %v1247 = vadd.f32 0.0, %v1246
        %v1248 = vpop.f32.mrf.mxu0
        %v1249 = vadd.f32 0.0, %v1248
        %v1250 = vpop.f32.mrf.mxu0
        %v1251 = vpop.f32.mrf.mxu0
        %1252 = vdwg.mxu0
        %v1253 = vadd.f32 %v1172, %v1247
        %v1254 = vadd.f32 %v1173, %v1249
        %1255 = vrot.lane.b32.xlu0 %v604, 111
        %v1256 = vpop.permute.xlu0 %1255
        %1257 = vrot.lane.b32.xlu0 %v607, 111
        %v1258 = vpop.permute.xlu0 %1257
        %vm1259 = vcmask 908288
        %v1260 = vsel %vm1259, %v1256, %v1258
        %vm1262 = vcmask 908288
        %v1265 = vsel %vm1262, %v1258, %v1256
        %v1267 = vld [vmem:[%s3 + $0x8] sm:$0x11]
        %v1269 = vunpack.c.l.b16 %v1267
        %v1270 = vunpack.c.h.b16 %v1267
        %v1271 = vpack.c.b16 %v1269, %v1269
        %v1272 = vpack.c.b16 %v1270, %v1270
        %v1274 = vpack.i.b16 %v1271, %v1271
        %v1276 = vlaneseq
        %v1277 = vshrl.u32 %v1276, 7
        %v1278 = vsub.s32 0, %v1277
        %v1279 = vrot.slane %v1274, %v1278
        %v1281 = vpack.i.b16 %v1272, %v1272
        %v1283 = vlaneseq
        %v1284 = vshrl.u32 %v1283, 7
        %v1285 = vsub.s32 0, %v1284
        %v1286 = vrot.slane %v1281, %v1285
        %v1287 = vmul.bf16 %v1260, %v1279
        %v1288 = vmul.bf16 %v1265, %v1286
        %s1289 = scalar_lea.vmem %s4, 16
        %v1290 = vld [vmem:[%s1289] sm:$0x3]
        %v1292 = vsel %vm340, %v1290, 0
        %v1295 = vsel %vm347, %v1287, 0
        %v1298 = vsel %vm347, %v1288, 0
        %1300 = vmatprep.subr.bf16.mxu0 0
        %1301 = vmatpush1.bf16.msra.mxu0 0
        %1302 = vmatprep.subr.bf16.mxu0 0
        %1303 = vmatpush1.bf16.msra.mxu0 0
        %1304 = vmatprep.subr.bf16.mxu0 0
        %1305 = vmatpush1.bf16.msra.mxu0 0
        %1306 = vmatprep.subr.bf16.mxu0 0
        %1307 = vmatpush1.bf16.msra.mxu0 0
        %1308 = vmatprep.subr.bf16.mxu0 0
        %1309 = vmatpush1.bf16.msra.mxu0 0
        %1310 = vmatprep.subr.bf16.mxu0 0
        %1311 = vmatpush1.bf16.msra.mxu0 0
        %1312 = vmatprep.subr.bf16.mxu0 0
        %1313 = vmatpush1.bf16.msra.mxu0 0
        %1314 = vmatprep.subr.bf16.mxu0 %v1298
        %1315 = vmatpush1.bf16.msra.mxu0 %v1295
        %1316 = vmatprep.subr.bf16.mxu0 0
        %1317 = vmatpush2.bf16.msra.mxu0 0
        %1318 = vmatprep.subr.bf16.mxu0 0
        %1319 = vmatpush2.bf16.msra.mxu0 0
        %1320 = vmatprep.subr.bf16.mxu0 0
        %1321 = vmatpush2.bf16.msra.mxu0 0
        %1322 = vmatprep.subr.bf16.mxu0 0
        %1323 = vmatpush2.bf16.msra.mxu0 0
        %1324 = vmatprep.subr.bf16.mxu0 0
        %1325 = vmatpush2.bf16.msra.mxu0 0
        %1326 = vmatprep.subr.bf16.mxu0 0
        %1327 = vmatpush2.bf16.msra.mxu0 0
        %1328 = vmatprep.subr.bf16.mxu0 0
        %1329 = vmatpush2.bf16.msra.mxu0 0
        %1330 = vmatprep.subr.bf16.mxu0 0
        %1331 = vmatpush2.bf16.msra.mxu0 0
        %1332 = vmatprep.mubr.bf16.mxu0 0
        %1333 = vmatmul.mubr.bf16.gmra.mxu0 %v1292
        %v1334 = vpop.f32.mrf.mxu0
        %v1335 = vadd.f32 0.0, %v1334
        %v1336 = vpop.f32.mrf.mxu0
        %v1337 = vadd.f32 0.0, %v1336
        %v1338 = vpop.f32.mrf.mxu0
        %v1339 = vpop.f32.mrf.mxu0
        %1340 = vdwg.mxu0
        %v1341 = vadd.f32 %v1253, %v1335
        %v1342 = vadd.f32 %v1254, %v1337
        %v1343 = vld [vmem:[%s5] sm:$0xf]
        %1345 = vset.pattern.permute.xlu0 0
        %1346 = vperm.xlu0 %1345, %v1343
        %v1347 = vpop.permute.xlu0 %1346
        %v1349 = vadd.f32 %v1341, %v1347
        %v1350 = vadd.f32 %v1342, %v1347
        %v1351 = vmax.f32 %v1349, 0.0
        %v1352 = vmax.f32 %v1350, 0.0
        %v1353 = vpack.c.bf16 %v1351, %v1351
        %v1354 = vpack.c.bf16 %v1352, %v1352
        %1356 = vrot.lane.b32.xlu0 %v1354, 17
        %v1357 = vpop.permute.xlu0 %1356
        %1359 = vrot.lane.b32.xlu0 %v1353, 17
        %v1360 = vpop.permute.xlu0 %1359
        %v1361 = vsel %vm614, %v1360, %v1357
        %v1365 = vsel %vm617, %v1357, %v1360
        %v1367 = vmul.bf16 %v1365, %v634
        %v1368 = vmul.bf16 %v1361, %v641
        %v1369 = vld [vmem:[%s6] sm:$0x3]
        %1370 = vrot.lane.b32.xlu0 %v1354, 16
        %v1371 = vpop.permute.xlu0 %1370
        %1372 = vrot.lane.b32.xlu0 %v1353, 16
        %v1373 = vpop.permute.xlu0 %1372
        %v1374 = vsel %vm649, %v1373, %v1371
        %v1378 = vsel %vm550, %v1371, %v1373
        %v1380 = vmul.bf16 %v1378, %v662
        %v1381 = vmul.bf16 %v1374, %v669
        %s1382 = scalar_lea.vmem %s6, 2
        %v1383 = vld [vmem:[%s1382] sm:$0x3]
        %vm1384 = vcmask 31744
        %v1386 = vsel %vm1384, %v1383, 0
        %v1389 = vsel %vm601, %v1380, 0
        %v1392 = vsel %vm601, %v1381, 0
        %1394 = vmatprep.subr.bf16.mxu0 0
        %1395 = vmatpush1.bf16.msra.mxu0 0
        %1396 = vmatprep.subr.bf16.mxu0 0
        %1397 = vmatpush1.bf16.msra.mxu0 0
        %1398 = vmatprep.subr.bf16.mxu0 0
        %1399 = vmatpush1.bf16.msra.mxu0 0
        %1400 = vmatprep.subr.bf16.mxu0 0
        %1401 = vmatpush1.bf16.msra.mxu0 0
        %1402 = vmatprep.subr.bf16.mxu0 0
        %1403 = vmatpush1.bf16.msra.mxu0 0
        %1404 = vmatprep.subr.bf16.mxu0 0
        %1405 = vmatpush1.bf16.msra.mxu0 0
        %1406 = vmatprep.subr.bf16.mxu0 0
        %1407 = vmatpush1.bf16.msra.mxu0 0
        %1408 = vmatprep.subr.bf16.mxu0 %v1392
        %1409 = vmatpush1.bf16.msra.mxu0 %v1389
        %1410 = vmatprep.subr.bf16.mxu0 0
        %1411 = vmatpush2.bf16.msra.mxu0 0
        %1412 = vmatprep.subr.bf16.mxu0 0
        %1413 = vmatpush2.bf16.msra.mxu0 0
        %1414 = vmatprep.subr.bf16.mxu0 0
        %1415 = vmatpush2.bf16.msra.mxu0 0
        %1416 = vmatprep.subr.bf16.mxu0 0
        %1417 = vmatpush2.bf16.msra.mxu0 0
        %1418 = vmatprep.subr.bf16.mxu0 0
        %1419 = vmatpush2.bf16.msra.mxu0 0
        %1420 = vmatprep.subr.bf16.mxu0 0
        %1421 = vmatpush2.bf16.msra.mxu0 0
        %1422 = vmatprep.subr.bf16.mxu0 0
        %1423 = vmatpush2.bf16.msra.mxu0 0
        %1424 = vmatprep.subr.bf16.mxu0 0
        %1425 = vmatpush2.bf16.msra.mxu0 0
        %1426 = vmatprep.mubr.bf16.mxu0 0
        %1427 = vmatmul.mubr.bf16.gmra.mxu0 %v1386
        %v1428 = vpop.f32.mrf.mxu0
        %v1429 = vadd.f32 0.0, %v1428
        %v1430 = vpop.f32.mrf.mxu0
        %v1431 = vadd.f32 0.0, %v1430
        %v1432 = vpop.f32.mrf.mxu0
        %v1433 = vpop.f32.mrf.mxu0
        %1434 = vdwg.mxu0
        %v1436 = vsel %vm1384, %v1369, 0
        %v1439 = vsel %vm601, %v1367, 0
        %v1442 = vsel %vm601, %v1368, 0
        %1444 = vmatprep.subr.bf16.mxu0 0
        %1445 = vmatpush1.bf16.msra.mxu0 0
        %1446 = vmatprep.subr.bf16.mxu0 0
        %1447 = vmatpush1.bf16.msra.mxu0 0
        %1448 = vmatprep.subr.bf16.mxu0 0
        %1449 = vmatpush1.bf16.msra.mxu0 0
        %1450 = vmatprep.subr.bf16.mxu0 0
        %1451 = vmatpush1.bf16.msra.mxu0 0
        %1452 = vmatprep.subr.bf16.mxu0 0
        %1453 = vmatpush1.bf16.msra.mxu0 0
        %1454 = vmatprep.subr.bf16.mxu0 0
        %1455 = vmatpush1.bf16.msra.mxu0 0
        %1456 = vmatprep.subr.bf16.mxu0 0
        %1457 = vmatpush1.bf16.msra.mxu0 0
        %1458 = vmatprep.subr.bf16.mxu0 %v1442
        %1459 = vmatpush1.bf16.msra.mxu0 %v1439
        %1460 = vmatprep.subr.bf16.mxu0 0
        %1461 = vmatpush2.bf16.msra.mxu0 0
        %1462 = vmatprep.subr.bf16.mxu0 0
        %1463 = vmatpush2.bf16.msra.mxu0 0
        %1464 = vmatprep.subr.bf16.mxu0 0
        %1465 = vmatpush2.bf16.msra.mxu0 0
        %1466 = vmatprep.subr.bf16.mxu0 0
        %1467 = vmatpush2.bf16.msra.mxu0 0
        %1468 = vmatprep.subr.bf16.mxu0 0
        %1469 = vmatpush2.bf16.msra.mxu0 0
        %1470 = vmatprep.subr.bf16.mxu0 0
        %1471 = vmatpush2.bf16.msra.mxu0 0
        %1472 = vmatprep.subr.bf16.mxu0 0
        %1473 = vmatpush2.bf16.msra.mxu0 0
        %1474 = vmatprep.subr.bf16.mxu0 0
        %1475 = vmatpush2.bf16.msra.mxu0 0
        %1476 = vmatprep.mubr.bf16.mxu0 0
        %1477 = vmatmul.mubr.bf16.gmra.mxu0 %v1436
        %v1478 = vpop.f32.mrf.mxu0
        %v1479 = vadd.f32 %v1429, %v1478
        %v1480 = vpop.f32.mrf.mxu0
        %v1481 = vadd.f32 %v1431, %v1480
        %v1482 = vpop.f32.mrf.mxu0
        %v1483 = vpop.f32.mrf.mxu0
        %1484 = vdwg.mxu0
        %1485 = vrot.lane.b32.xlu0 %v1354, 15
        %v1486 = vpop.permute.xlu0 %1485
        %1487 = vrot.lane.b32.xlu0 %v1353, 15
        %v1488 = vpop.permute.xlu0 %1487
        %v1489 = vsel %vm778, %v1488, %v1486
        %v1493 = vsel %vm781, %v1486, %v1488
        %v1495 = vmul.bf16 %v1493, %v798
        %v1496 = vmul.bf16 %v1489, %v805
        %s1497 = scalar_lea.vmem %s6, 4
        %v1498 = vld [vmem:[%s1497] sm:$0x3]
        %v1500 = vsel %vm1384, %v1498, 0
        %v1503 = vsel %vm601, %v1495, 0
        %v1506 = vsel %vm601, %v1496, 0
        %1508 = vmatprep.subr.bf16.mxu0 0
        %1509 = vmatpush1.bf16.msra.mxu0 0
        %1510 = vmatprep.subr.bf16.mxu0 0
        %1511 = vmatpush1.bf16.msra.mxu0 0
        %1512 = vmatprep.subr.bf16.mxu0 0
        %1513 = vmatpush1.bf16.msra.mxu0 0
        %1514 = vmatprep.subr.bf16.mxu0 0
        %1515 = vmatpush1.bf16.msra.mxu0 0
        %1516 = vmatprep.subr.bf16.mxu0 0
        %1517 = vmatpush1.bf16.msra.mxu0 0
        %1518 = vmatprep.subr.bf16.mxu0 0
        %1519 = vmatpush1.bf16.msra.mxu0 0
        %1520 = vmatprep.subr.bf16.mxu0 0
        %1521 = vmatpush1.bf16.msra.mxu0 0
        %1522 = vmatprep.subr.bf16.mxu0 %v1506
        %1523 = vmatpush1.bf16.msra.mxu0 %v1503
        %1524 = vmatprep.subr.bf16.mxu0 0
        %1525 = vmatpush2.bf16.msra.mxu0 0
        %1526 = vmatprep.subr.bf16.mxu0 0
        %1527 = vmatpush2.bf16.msra.mxu0 0
        %1528 = vmatprep.subr.bf16.mxu0 0
        %1529 = vmatpush2.bf16.msra.mxu0 0
        %1530 = vmatprep.subr.bf16.mxu0 0
        %1531 = vmatpush2.bf16.msra.mxu0 0
        %1532 = vmatprep.subr.bf16.mxu0 0
        %1533 = vmatpush2.bf16.msra.mxu0 0
        %1534 = vmatprep.subr.bf16.mxu0 0
        %1535 = vmatpush2.bf16.msra.mxu0 0
        %1536 = vmatprep.subr.bf16.mxu0 0
        %1537 = vmatpush2.bf16.msra.mxu0 0
        %1538 = vmatprep.subr.bf16.mxu0 0
        %1539 = vmatpush2.bf16.msra.mxu0 0
        %1540 = vmatprep.mubr.bf16.mxu0 0
        %1541 = vmatmul.mubr.bf16.gmra.mxu0 %v1500
        %v1542 = vpop.f32.mrf.mxu0
        %v1543 = vadd.f32 0.0, %v1542
        %v1544 = vpop.f32.mrf.mxu0
        %v1545 = vadd.f32 0.0, %v1544
        %v1546 = vpop.f32.mrf.mxu0
        %v1547 = vpop.f32.mrf.mxu0
        %1548 = vdwg.mxu0
        %v1549 = vadd.f32 %v1479, %v1543
        %v1550 = vadd.f32 %v1481, %v1545
        %1551 = vrot.lane.b32.xlu0 %v1354, 1
        %v1552 = vpop.permute.xlu0 %1551
        %1553 = vrot.lane.b32.xlu0 %v1353, 1
        %v1554 = vpop.permute.xlu0 %1553
        %v1555 = vsel %vm866, %v1554, %v1552
        %v1559 = vsel %vm869, %v1552, %v1554
        %v1561 = vmul.bf16 %v1559, %v880
        %v1562 = vmul.bf16 %v1555, %v887
        %s1563 = scalar_lea.vmem %s6, 6
        %v1564 = vld [vmem:[%s1563] sm:$0x3]
        %v1566 = vsel %vm1384, %v1564, 0
        %v1569 = vsel %vm601, %v1561, 0
        %v1572 = vsel %vm601, %v1562, 0
        %1574 = vmatprep.subr.bf16.mxu0 0
        %1575 = vmatpush1.bf16.msra.mxu0 0
        %1576 = vmatprep.subr.bf16.mxu0 0
        %1577 = vmatpush1.bf16.msra.mxu0 0
        %1578 = vmatprep.subr.bf16.mxu0 0
        %1579 = vmatpush1.bf16.msra.mxu0 0
        %1580 = vmatprep.subr.bf16.mxu0 0
        %1581 = vmatpush1.bf16.msra.mxu0 0
        %1582 = vmatprep.subr.bf16.mxu0 0
        %1583 = vmatpush1.bf16.msra.mxu0 0
        %1584 = vmatprep.subr.bf16.mxu0 0
        %1585 = vmatpush1.bf16.msra.mxu0 0
        %1586 = vmatprep.subr.bf16.mxu0 0
        %1587 = vmatpush1.bf16.msra.mxu0 0
        %1588 = vmatprep.subr.bf16.mxu0 %v1572
        %1589 = vmatpush1.bf16.msra.mxu0 %v1569
        %1590 = vmatprep.subr.bf16.mxu0 0
        %1591 = vmatpush2.bf16.msra.mxu0 0
        %1592 = vmatprep.subr.bf16.mxu0 0
        %1593 = vmatpush2.bf16.msra.mxu0 0
        %1594 = vmatprep.subr.bf16.mxu0 0
        %1595 = vmatpush2.bf16.msra.mxu0 0
        %1596 = vmatprep.subr.bf16.mxu0 0
        %1597 = vmatpush2.bf16.msra.mxu0 0
        %1598 = vmatprep.subr.bf16.mxu0 0
        %1599 = vmatpush2.bf16.msra.mxu0 0
        %1600 = vmatprep.subr.bf16.mxu0 0
        %1601 = vmatpush2.bf16.msra.mxu0 0
        %1602 = vmatprep.subr.bf16.mxu0 0
        %1603 = vmatpush2.bf16.msra.mxu0 0
        %1604 = vmatprep.subr.bf16.mxu0 0
        %1605 = vmatpush2.bf16.msra.mxu0 0
        %1606 = vmatprep.mubr.bf16.mxu0 0
        %1607 = vmatmul.mubr.bf16.gmra.mxu0 %v1566
        %v1608 = vpop.f32.mrf.mxu0
        %v1609 = vadd.f32 0.0, %v1608
        %v1610 = vpop.f32.mrf.mxu0
        %v1611 = vadd.f32 0.0, %v1610
        %v1612 = vpop.f32.mrf.mxu0
        %v1613 = vpop.f32.mrf.mxu0
        %1614 = vdwg.mxu0
        %v1615 = vadd.f32 %v1549, %v1609
        %v1616 = vadd.f32 %v1550, %v1611
        %s1617 = scalar_lea.vmem %s6, 8
        %v1618 = vld [vmem:[%s1617] sm:$0x3]
        %v1620 = vsel %vm1384, %v1618, 0
        %v1623 = vsel %vm601, %v1353, 0
        %v1626 = vsel %vm601, %v1354, 0
        %1628 = vmatprep.subr.bf16.mxu0 0
        %1629 = vmatpush1.bf16.msra.mxu0 0
        %1630 = vmatprep.subr.bf16.mxu0 0
        %1631 = vmatpush1.bf16.msra.mxu0 0
        %1632 = vmatprep.subr.bf16.mxu0 0
        %1633 = vmatpush1.bf16.msra.mxu0 0
        %1634 = vmatprep.subr.bf16.mxu0 0
        %1635 = vmatpush1.bf16.msra.mxu0 0
        %1636 = vmatprep.subr.bf16.mxu0 0
        %1637 = vmatpush1.bf16.msra.mxu0 0
        %1638 = vmatprep.subr.bf16.mxu0 0
        %1639 = vmatpush1.bf16.msra.mxu0 0
        %1640 = vmatprep.subr.bf16.mxu0 0
        %1641 = vmatpush1.bf16.msra.mxu0 0
        %1642 = vmatprep.subr.bf16.mxu0 %v1626
        %1643 = vmatpush1.bf16.msra.mxu0 %v1623
        %1644 = vmatprep.subr.bf16.mxu0 0
        %1645 = vmatpush2.bf16.msra.mxu0 0
        %1646 = vmatprep.subr.bf16.mxu0 0
        %1647 = vmatpush2.bf16.msra.mxu0 0
        %1648 = vmatprep.subr.bf16.mxu0 0
        %1649 = vmatpush2.bf16.msra.mxu0 0
        %1650 = vmatprep.subr.bf16.mxu0 0
        %1651 = vmatpush2.bf16.msra.mxu0 0
        %1652 = vmatprep.subr.bf16.mxu0 0
        %1653 = vmatpush2.bf16.msra.mxu0 0
        %1654 = vmatprep.subr.bf16.mxu0 0
        %1655 = vmatpush2.bf16.msra.mxu0 0
        %1656 = vmatprep.subr.bf16.mxu0 0
        %1657 = vmatpush2.bf16.msra.mxu0 0
        %1658 = vmatprep.subr.bf16.mxu0 0
        %1659 = vmatpush2.bf16.msra.mxu0 0
        %1660 = vmatprep.mubr.bf16.mxu0 0
        %1661 = vmatmul.mubr.bf16.gmra.mxu0 %v1620
        %v1662 = vpop.f32.mrf.mxu0
        %v1663 = vadd.f32 0.0, %v1662
        %v1664 = vpop.f32.mrf.mxu0
        %v1665 = vadd.f32 0.0, %v1664
        %v1666 = vpop.f32.mrf.mxu0
        %v1667 = vpop.f32.mrf.mxu0
        %1668 = vdwg.mxu0
        %v1669 = vadd.f32 %v1615, %v1663
        %v1670 = vadd.f32 %v1616, %v1665
        %1671 = vrot.lane.b32.xlu0 %v1353, 127
        %v1672 = vpop.permute.xlu0 %1671
        %1673 = vrot.lane.b32.xlu0 %v1354, 127
        %v1674 = vpop.permute.xlu0 %1673
        %v1675 = vsel %vm1000, %v1672, %v1674
        %v1679 = vsel %vm1003, %v1674, %v1672
        %v1681 = vmul.bf16 %v1675, %v1021
        %v1682 = vmul.bf16 %v1679, %v1029
        %s1683 = scalar_lea.vmem %s6, 10
        %v1684 = vld [vmem:[%s1683] sm:$0x3]
        %v1686 = vsel %vm1384, %v1684, 0
        %v1689 = vsel %vm601, %v1681, 0
        %v1692 = vsel %vm601, %v1682, 0
        %1694 = vmatprep.subr.bf16.mxu0 0
        %1695 = vmatpush1.bf16.msra.mxu0 0
        %1696 = vmatprep.subr.bf16.mxu0 0
        %1697 = vmatpush1.bf16.msra.mxu0 0
        %1698 = vmatprep.subr.bf16.mxu0 0
        %1699 = vmatpush1.bf16.msra.mxu0 0
        %1700 = vmatprep.subr.bf16.mxu0 0
        %1701 = vmatpush1.bf16.msra.mxu0 0
        %1702 = vmatprep.subr.bf16.mxu0 0
        %1703 = vmatpush1.bf16.msra.mxu0 0
        %1704 = vmatprep.subr.bf16.mxu0 0
        %1705 = vmatpush1.bf16.msra.mxu0 0
        %1706 = vmatprep.subr.bf16.mxu0 0
        %1707 = vmatpush1.bf16.msra.mxu0 0
        %1708 = vmatprep.subr.bf16.mxu0 %v1692
        %1709 = vmatpush1.bf16.msra.mxu0 %v1689
        %1710 = vmatprep.subr.bf16.mxu0 0
        %1711 = vmatpush2.bf16.msra.mxu0 0
        %1712 = vmatprep.subr.bf16.mxu0 0
        %1713 = vmatpush2.bf16.msra.mxu0 0
        %1714 = vmatprep.subr.bf16.mxu0 0
        %1715 = vmatpush2.bf16.msra.mxu0 0
        %1716 = vmatprep.subr.bf16.mxu0 0
        %1717 = vmatpush2.bf16.msra.mxu0 0
        %1718 = vmatprep.subr.bf16.mxu0 0
        %1719 = vmatpush2.bf16.msra.mxu0 0
        %1720 = vmatprep.subr.bf16.mxu0 0
        %1721 = vmatpush2.bf16.msra.mxu0 0
        %1722 = vmatprep.subr.bf16.mxu0 0
        %1723 = vmatpush2.bf16.msra.mxu0 0
        %1724 = vmatprep.subr.bf16.mxu0 0
        %1725 = vmatpush2.bf16.msra.mxu0 0
        %1726 = vmatprep.mubr.bf16.mxu0 0
        %1727 = vmatmul.mubr.bf16.gmra.mxu0 %v1686
        %v1728 = vpop.f32.mrf.mxu0
        %v1729 = vadd.f32 0.0, %v1728
        %v1730 = vpop.f32.mrf.mxu0
        %v1731 = vadd.f32 0.0, %v1730
        %v1732 = vpop.f32.mrf.mxu0
        %v1733 = vpop.f32.mrf.mxu0
        %1734 = vdwg.mxu0
        %v1735 = vadd.f32 %v1669, %v1729
        %v1736 = vadd.f32 %v1670, %v1731
        %1737 = vrot.lane.b32.xlu0 %v1353, 113
        %v1738 = vpop.permute.xlu0 %1737
        %1739 = vrot.lane.b32.xlu0 %v1354, 113
        %v1740 = vpop.permute.xlu0 %1739
        %v1741 = vsel %vm1090, %v1738, %v1740
        %v1745 = vsel %vm1093, %v1740, %v1738
        %v1747 = vmul.bf16 %v1741, %v1110
        %v1748 = vmul.bf16 %v1745, %v1117
        %s1749 = scalar_lea.vmem %s6, 12
        %v1750 = vld [vmem:[%s1749] sm:$0x3]
        %v1752 = vsel %vm1384, %v1750, 0
        %v1755 = vsel %vm601, %v1747, 0
        %v1758 = vsel %vm601, %v1748, 0
        %1760 = vmatprep.subr.bf16.mxu0 0
        %1761 = vmatpush1.bf16.msra.mxu0 0
        %1762 = vmatprep.subr.bf16.mxu0 0
        %1763 = vmatpush1.bf16.msra.mxu0 0
        %1764 = vmatprep.subr.bf16.mxu0 0
        %1765 = vmatpush1.bf16.msra.mxu0 0
        %1766 = vmatprep.subr.bf16.mxu0 0
        %1767 = vmatpush1.bf16.msra.mxu0 0
        %1768 = vmatprep.subr.bf16.mxu0 0
        %1769 = vmatpush1.bf16.msra.mxu0 0
        %1770 = vmatprep.subr.bf16.mxu0 0
        %1771 = vmatpush1.bf16.msra.mxu0 0
        %1772 = vmatprep.subr.bf16.mxu0 0
        %1773 = vmatpush1.bf16.msra.mxu0 0
        %1774 = vmatprep.subr.bf16.mxu0 %v1758
        %1775 = vmatpush1.bf16.msra.mxu0 %v1755
        %1776 = vmatprep.subr.bf16.mxu0 0
        %1777 = vmatpush2.bf16.msra.mxu0 0
        %1778 = vmatprep.subr.bf16.mxu0 0
        %1779 = vmatpush2.bf16.msra.mxu0 0
        %1780 = vmatprep.subr.bf16.mxu0 0
        %1781 = vmatpush2.bf16.msra.mxu0 0
        %1782 = vmatprep.subr.bf16.mxu0 0
        %1783 = vmatpush2.bf16.msra.mxu0 0
        %1784 = vmatprep.subr.bf16.mxu0 0
        %1785 = vmatpush2.bf16.msra.mxu0 0
        %1786 = vmatprep.subr.bf16.mxu0 0
        %1787 = vmatpush2.bf16.msra.mxu0 0
        %1788 = vmatprep.subr.bf16.mxu0 0
        %1789 = vmatpush2.bf16.msra.mxu0 0
        %1790 = vmatprep.subr.bf16.mxu0 0
        %1791 = vmatpush2.bf16.msra.mxu0 0
        %1792 = vmatprep.mubr.bf16.mxu0 0
        %1793 = vmatmul.mubr.bf16.gmra.mxu0 %v1752
        %v1794 = vpop.f32.mrf.mxu0
        %v1795 = vadd.f32 0.0, %v1794
        %v1796 = vpop.f32.mrf.mxu0
        %v1797 = vadd.f32 0.0, %v1796
        %v1798 = vpop.f32.mrf.mxu0
        %v1799 = vpop.f32.mrf.mxu0
        %1800 = vdwg.mxu0
        %v1801 = vadd.f32 %v1735, %v1795
        %v1802 = vadd.f32 %v1736, %v1797
        %1803 = vrot.lane.b32.xlu0 %v1353, 112
        %v1804 = vpop.permute.xlu0 %1803
        %1805 = vrot.lane.b32.xlu0 %v1354, 112
        %v1806 = vpop.permute.xlu0 %1805
        %v1807 = vsel %vm1178, %v1804, %v1806
        %v1811 = vsel %vm569, %v1806, %v1804
        %v1813 = vmul.bf16 %v1807, %v1191
        %v1814 = vmul.bf16 %v1811, %v1198
        %s1815 = scalar_lea.vmem %s6, 14
        %v1816 = vld [vmem:[%s1815] sm:$0x3]
        %v1818 = vsel %vm1384, %v1816, 0
        %v1821 = vsel %vm601, %v1813, 0
        %v1824 = vsel %vm601, %v1814, 0
        %1826 = vmatprep.subr.bf16.mxu0 0
        %1827 = vmatpush1.bf16.msra.mxu0 0
        %1828 = vmatprep.subr.bf16.mxu0 0
        %1829 = vmatpush1.bf16.msra.mxu0 0
        %1830 = vmatprep.subr.bf16.mxu0 0
        %1831 = vmatpush1.bf16.msra.mxu0 0
        %1832 = vmatprep.subr.bf16.mxu0 0
        %1833 = vmatpush1.bf16.msra.mxu0 0
        %1834 = vmatprep.subr.bf16.mxu0 0
        %1835 = vmatpush1.bf16.msra.mxu0 0
        %1836 = vmatprep.subr.bf16.mxu0 0
        %1837 = vmatpush1.bf16.msra.mxu0 0
        %1838 = vmatprep.subr.bf16.mxu0 0
        %1839 = vmatpush1.bf16.msra.mxu0 0
        %1840 = vmatprep.subr.bf16.mxu0 %v1824
        %1841 = vmatpush1.bf16.msra.mxu0 %v1821
        %1842 = vmatprep.subr.bf16.mxu0 0
        %1843 = vmatpush2.bf16.msra.mxu0 0
        %1844 = vmatprep.subr.bf16.mxu0 0
        %1845 = vmatpush2.bf16.msra.mxu0 0
        %1846 = vmatprep.subr.bf16.mxu0 0
        %1847 = vmatpush2.bf16.msra.mxu0 0
        %1848 = vmatprep.subr.bf16.mxu0 0
        %1849 = vmatpush2.bf16.msra.mxu0 0
        %1850 = vmatprep.subr.bf16.mxu0 0
        %1851 = vmatpush2.bf16.msra.mxu0 0
        %1852 = vmatprep.subr.bf16.mxu0 0
        %1853 = vmatpush2.bf16.msra.mxu0 0
        %1854 = vmatprep.subr.bf16.mxu0 0
        %1855 = vmatpush2.bf16.msra.mxu0 0
        %1856 = vmatprep.subr.bf16.mxu0 0
        %1857 = vmatpush2.bf16.msra.mxu0 0
        %1858 = vmatprep.mubr.bf16.mxu0 0
        %1859 = vmatmul.mubr.bf16.gmra.mxu0 %v1818
        %v1860 = vpop.f32.mrf.mxu0
        %v1861 = vadd.f32 0.0, %v1860
        %v1862 = vpop.f32.mrf.mxu0
        %v1863 = vadd.f32 0.0, %v1862
        %v1864 = vpop.f32.mrf.mxu0
        %v1865 = vpop.f32.mrf.mxu0
        %1866 = vdwg.mxu0
        %v1867 = vadd.f32 %v1801, %v1861
        %v1868 = vadd.f32 %v1802, %v1863
        %1869 = vrot.lane.b32.xlu0 %v1353, 111
        %v1870 = vpop.permute.xlu0 %1869
        %1871 = vrot.lane.b32.xlu0 %v1354, 111
        %v1872 = vpop.permute.xlu0 %1871
        %v1873 = vsel %vm1259, %v1870, %v1872
        %v1877 = vsel %vm1262, %v1872, %v1870
        %v1879 = vmul.bf16 %v1873, %v1279
        %v1880 = vmul.bf16 %v1877, %v1286
        %s1881 = scalar_lea.vmem %s6, 16
        %v1882 = vld [vmem:[%s1881] sm:$0x3]
        %v1884 = vsel %vm1384, %v1882, 0
        %v1887 = vsel %vm601, %v1879, 0
        %v1890 = vsel %vm601, %v1880, 0
        %1892 = vmatprep.subr.bf16.mxu0 0
        %1893 = vmatpush1.bf16.msra.mxu0 0
        %1894 = vmatprep.subr.bf16.mxu0 0
        %1895 = vmatpush1.bf16.msra.mxu0 0
        %1896 = vmatprep.subr.bf16.mxu0 0
        %1897 = vmatpush1.bf16.msra.mxu0 0
        %1898 = vmatprep.subr.bf16.mxu0 0
        %1899 = vmatpush1.bf16.msra.mxu0 0
        %1900 = vmatprep.subr.bf16.mxu0 0
        %1901 = vmatpush1.bf16.msra.mxu0 0
        %1902 = vmatprep.subr.bf16.mxu0 0
        %1903 = vmatpush1.bf16.msra.mxu0 0
        %1904 = vmatprep.subr.bf16.mxu0 0
        %1905 = vmatpush1.bf16.msra.mxu0 0
        %1906 = vmatprep.subr.bf16.mxu0 %v1890
        %1907 = vmatpush1.bf16.msra.mxu0 %v1887
        %1908 = vmatprep.subr.bf16.mxu0 0
        %1909 = vmatpush2.bf16.msra.mxu0 0
        %1910 = vmatprep.subr.bf16.mxu0 0
        %1911 = vmatpush2.bf16.msra.mxu0 0
        %1912 = vmatprep.subr.bf16.mxu0 0
        %1913 = vmatpush2.bf16.msra.mxu0 0
        %1914 = vmatprep.subr.bf16.mxu0 0
        %1915 = vmatpush2.bf16.msra.mxu0 0
        %1916 = vmatprep.subr.bf16.mxu0 0
        %1917 = vmatpush2.bf16.msra.mxu0 0
        %1918 = vmatprep.subr.bf16.mxu0 0
        %1919 = vmatpush2.bf16.msra.mxu0 0
        %1920 = vmatprep.subr.bf16.mxu0 0
        %1921 = vmatpush2.bf16.msra.mxu0 0
        %1922 = vmatprep.subr.bf16.mxu0 0
        %1923 = vmatpush2.bf16.msra.mxu0 0
        %1924 = vmatprep.mubr.bf16.mxu0 0
        %1925 = vmatmul.mubr.bf16.gmra.mxu0 %v1884
        %v1926 = vpop.f32.mrf.mxu0
        %v1927 = vadd.f32 0.0, %v1926
        %v1928 = vpop.f32.mrf.mxu0
        %v1929 = vadd.f32 0.0, %v1928
        %v1930 = vpop.f32.mrf.mxu0
        %v1931 = vpop.f32.mrf.mxu0
        %1932 = vdwg.mxu0
        %v1933 = vadd.f32 %v1867, %v1927
        %v1934 = vadd.f32 %v1868, %v1929
        %v1935 = vld [vmem:[%s7] sm:$0xf]
        %1937 = vset.pattern.permute.xlu0 0
        %1938 = vperm.xlu0 %1937, %v1935
        %v1939 = vpop.permute.xlu0 %1938
        %v1941 = vadd.f32 %v1933, %v1939
        %v1942 = vadd.f32 %v1934, %v1939
        %v1943 = vmax.f32 %v1941, 0.0
        %v1944 = vmax.f32 %v1942, 0.0
        %v1947 = vcombine.low %v1943, %v1944
        %1949 = vst [vmem:[%s313] sm:$0xff] %v1947
        %s1950 = sand.u32 %s208, 1
        %s1951 = scalar_lea.sflag [#allocation3], %s1950
        %s1952 = sand.u32 %s208, 1
        %s1953 = smul.addr %s1952, 8
        %s1954 = scalar_lea.vmem [#allocation2], %s1953
        // Predicated region
        $region53: #{tpu_custom_call.1} parent=51 // pred_check
          %p1955 = pneg %p218
        $region54: #{tpu_custom_call.1} parent=51 // pred_check_branch
          %1957 = sbr.rel (%p1955) target = $region56
        $region55: #{tpu_custom_call.1} parent=51 // pred_region
          %s1959 = ssub.s32 128, 128
          %1960 = vsyncadd %s1951, %s1959
          %s1961 = smul.addr %s22, 2
          %s1962 = smul.addr %s1961, 64
          %s1963 = scalar_lea.hbm %s8, %s1962
          %s1965 = sshll.u32 %s1954, 4
          %s1966 = int_to_ptr.vmem [resolvable:$true] %s1965
          %1968 = dma.vmem_to_hbm [thread:$0]  %s1966, 128, %s1963, %s1951
        $region56: #{tpu_custom_call.1} parent=51 // pred_fallthru
          _
      $region52: #{tpu_custom_call.1} parent=5 // pred_fallthru
        _
      %p1969 = scmp.le.s32.totalorder 2, %s17
      // Predicated region
      $region57: #{tpu_custom_call.1} parent=5 // pred_check
        %p1970 = pneg %p1969
      $region58: #{tpu_custom_call.1} parent=5 // pred_check_branch
        %1972 = sbr.rel (%p1970) target = $region60
      $region59: #{tpu_custom_call.1} parent=5 // pred_region
        %s1973 = ssub.s32 %s17, 2
        // Predicated region
        $region61: #{tpu_custom_call.1} parent=59 // pred_check
          %p1974 = pneg %p224
        $region62: #{tpu_custom_call.1} parent=59 // pred_check_branch
          %1976 = sbr.rel (%p1974) target = $region64
        $region63: #{tpu_custom_call.1} parent=59 // pred_region
          %s1977 = sand.u32 %s209, 1
          %s1978 = scalar_lea.sflag [#allocation3], %s1977
          %s1979 = sand.u32 %s209, 1
          %s1980 = smul.addr %s1979, 8
          %s1981 = scalar_lea.vmem [#allocation2], %s1980
          %1982 = dma.done %s1978, 128
        $region64: #{tpu_custom_call.1} parent=59 // pred_fallthru
          _
      $region60: #{tpu_custom_call.1} parent=5 // pred_fallthru
        _
    $region6: #{tpu_custom_call.1} parent=1 // loop_footer
      %s21 = sadd.s32 1, %s17
    $region7: #{tpu_custom_call.1} parent=1 // loop_footer_branch
      %16 = sbr.rel target = $region3
    $region8: #{tpu_custom_call.1} parent=1 // loop_exit
      _
    %1983 = vsyncpa [#allocation3], 1
    %s1984 = scalar_lea.sflag [#allocation3], 1
    %1985 = vsyncpa %s1984, 1

</llo_original>
